<compile_context>
chip_gen: v6e
topology: v6e:2x2x1
jax: 0.10.0
libtpu: 0.0.40
codegen_flags: <defaults>
</compile_context>

<pallas_src>
import functools
import math

import jax
import jax.numpy as jnp
from jax.experimental import pallas as pl
from jax.experimental.pallas import tpu as pltpu


def _cross_attn_kernel(q_ref, kv_ref,
                       wq_ref, bq_ref,
                       wkv_ref, bkv_ref,
                       wo_ref, bo_ref,
                       o_ref,
                       *, num_heads, head_dim, scale, approx_recip):
    """One grid step == one batch element (grid axis is 'parallel')."""
    H, hd = num_heads, head_dim
    hidden = H * hd

    q = q_ref[...]                      # (Sq,  Din)  matmul dtype (bf16 or f32)
    kv = kv_ref[...]                    # (Skv, Din)
    mxu_dtype = q.dtype
    sq = q.shape[0]
    skv = kv.shape[0]

    # ---- Fused projections: two wide MXU matmuls (f32 accumulation), no
    # activation broadcast over heads.  Softmax scale folded into Q once.
    qp = (jnp.dot(q, wq_ref[...], preferred_element_type=jnp.float32)
          + bq_ref[...]) * scale                                    # (Sq, hidden)
    kvp = (jnp.dot(kv, wkv_ref[...], preferred_element_type=jnp.float32)
           + bkv_ref[...])                                          # (Skv, 2*hidden)

    # ---- Head regroup: pure relayout (XLU work, idle relative to MXU/VPU).
    qh = qp.reshape(sq, H, hd).transpose(1, 0, 2).astype(mxu_dtype)   # (H, Sq, hd)
    kvh = kvp.reshape(skv, 2 * H, hd).transpose(1, 0, 2)              # (2H, Skv, hd)
    kh = kvh[:H].astype(mxu_dtype)                                    # (H, Skv, hd)
    vh = kvh[H:].astype(mxu_dtype)                                    # (H, Skv, hd)

    # ---- Attention: all heads in one batched contraction; softmax math in f32.
    scores = jnp.einsum('hqd,hkd->hqk', qh, kh,
                        preferred_element_type=jnp.float32)           # (H, Sq, Skv)
    m = jnp.max(scores, axis=-1, keepdims=True)
    e = jnp.exp(scores - m)
    denom = jnp.sum(e, axis=-1, keepdims=True)                        # (H, Sq, 1)

    # Deferred normalization: PV matmul on raw exp weights, then one
    # reciprocal-scaled multiply over the small (H, Sq, hd) result.
    ctx = jnp.einsum('hqk,hkd->hqd', e.astype(mxu_dtype), vh,
                     preferred_element_type=jnp.float32)              # (H, Sq, hd)
    ctx = ctx * pl.reciprocal(denom, approx=approx_recip)

    # ---- Re-pack heads along the lane axis; ONE output projection (K = hidden).
    ctx = ctx.transpose(1, 0, 2).reshape(sq, hidden).astype(mxu_dtype)  # (Sq, hidden)
    out = jnp.dot(ctx, wo_ref[...],
                  preferred_element_type=jnp.float32) + bo_ref[...]     # (Sq, Npad)

    o_ref[...] = out.astype(o_ref.dtype)        # lane-dense, unmasked store


def prepare_cross_attention_params(params, *, matmul_dtype=jnp.bfloat16):
    """One-time weight re-layout: hoist out of the per-call path."""
    _, hidden = params["wq"].shape
    n_pad = ((hidden + 127) // 128) * 128            # lane-dense output columns
    wkv = jnp.concatenate([params["wk"], params["wv"]], axis=1)       # (Din, 2*hidden)
    bkv = jnp.concatenate([params["bk"], params["bv"]], axis=1)       # (1, 2*hidden)
    wo_pad = jnp.zeros((hidden, n_pad), jnp.float32).at[:, :hidden].set(params["wo"])
    bo_pad = jnp.zeros((1, n_pad), jnp.float32).at[:, :hidden].set(params["bo"])
    return dict(
        wq=params["wq"].astype(matmul_dtype),
        bq=params["bq"].astype(jnp.float32),          # bias-adds stay f32
        wkv=wkv.astype(matmul_dtype),
        bkv=bkv.astype(jnp.float32),
        wo=wo_pad.astype(matmul_dtype),
        bo=bo_pad,
        hidden=hidden,
        n_pad=n_pad,
        matmul_dtype=jnp.dtype(matmul_dtype),
    )


def cross_attention(q, kv, prep, *, num_heads):
    """q: (B, Sq, Din), kv: (B, Skv, Din) -> (B, Sq, hidden)."""
    B, Sq, Din = q.shape
    _, Skv, _ = kv.shape
    hidden, n_pad = prep["hidden"], prep["n_pad"]
    hd = hidden // num_heads
    mdt = prep["matmul_dtype"]

    qd = q.astype(mdt)            # halves activation DMA bytes when mdt == bf16
    kvd = kv.astype(mdt)

    kernel = functools.partial(
        _cross_attn_kernel,
        num_heads=num_heads, head_dim=hd,
        scale=1.0 / math.sqrt(float(hd)),
        approx_recip=(mdt == jnp.dtype(jnp.bfloat16)))

    rep = lambda b: (0, 0)        # weights/biases: same block every grid step

    out = pl.pallas_call(
        kernel,
        out_shape=jax.ShapeDtypeStruct((B, Sq, n_pad), q.dtype),
        grid=(B,),
        in_specs=[
            pl.BlockSpec((None, Sq, Din), lambda b: (b, 0, 0)),      # q
            pl.BlockSpec((None, Skv, Din), lambda b: (b, 0, 0)),     # kv
            pl.BlockSpec((Din, hidden), rep),                        # Wq
            pl.BlockSpec((1, hidden), rep),                          # bq
            pl.BlockSpec((Din, 2 * hidden), rep),                    # Wk|Wv fused
            pl.BlockSpec((1, 2 * hidden), rep),                      # bk|bv fused
            pl.BlockSpec((hidden, n_pad), rep),                      # Wo (padded)
            pl.BlockSpec((1, n_pad), rep),                           # bo (padded)
        ],
        out_specs=pl.BlockSpec((None, Sq, n_pad), lambda b: (b, 0, 0)),
        compiler_params=pltpu.CompilerParams(
            dimension_semantics=("parallel",),       # batch axis -> both TCs on v7x
            vmem_limit_bytes=32 * 1024 * 1024),
    )(qd, kvd, prep["wq"], prep["bq"], prep["wkv"], prep["bkv"],
      prep["wo"], prep["bo"])

    return out[:, :, :hidden]


def init_params(key, input_dim, hidden_dim):
    """Deterministic Linear-layer params, stored as (in, out) + (1, out)."""
    def linear(k, fan_in, fan_out):
        kw, kb = jax.random.split(k)
        bound = 1.0 / jnp.sqrt(jnp.float32(fan_in))
        w = jax.random.uniform(kw, (fan_in, fan_out), jnp.float32, -bound, bound)
        b = jax.random.uniform(kb, (1, fan_out), jnp.float32, -bound, bound)
        return w, b

    k1, k2, k3, k4 = jax.random.split(key, 4)
    wq, bq = linear(k1, input_dim, hidden_dim)
    wk, bk = linear(k2, input_dim, hidden_dim)
    wv, bv = linear(k3, input_dim, hidden_dim)
    wo, bo = linear(k4, hidden_dim, hidden_dim)
    return dict(wq=wq, bq=bq, wk=wk, bk=bk, wv=wv, bv=bv, wo=wo, bo=bo)


def cross_attention_ref(q, kv, params, *, num_heads):
    """Pure-JAX reference mirroring the PyTorch forward exactly."""
    B, Sq, _ = q.shape
    _, Skv, _ = kv.shape
    hidden_dim = params["wq"].shape[1]
    head_dim = hidden_dim // num_heads

    query = q @ params["wq"] + params["bq"]
    key = kv @ params["wk"] + params["bk"]
    value = kv @ params["wv"] + params["bv"]

    query = query.reshape(B, Sq, num_heads, head_dim).transpose(0, 2, 1, 3)
    key = key.reshape(B, Skv, num_heads, head_dim).transpose(0, 2, 1, 3)
    value = value.reshape(B, Skv, num_heads, head_dim).transpose(0, 2, 1, 3)

    scores = jnp.einsum("bhqd,bhkd->bhqk", query, key) / jnp.sqrt(jnp.float32(head_dim))
    scores = jax.nn.softmax(scores, axis=-1)
    weighted = jnp.einsum("bhqk,bhkd->bhqd", scores, value)
    weighted = weighted.transpose(0, 2, 1, 3).reshape(B, Sq, hidden_dim)
    return weighted @ params["wo"] + params["bo"]


if __name__ == "__main__":
    # Shapes consistent with the module's forward:
    # q:  (batch=2, q_seq=8,  input_dim=16)
    # kv: (batch=2, kv_seq=8, input_dim=16)
    # hidden_dim=32, num_heads=4 -> head_dim=8
    B, Sq, Skv = 2, 8, 8
    input_dim, hidden_dim, num_heads = 16, 32, 4

    root = jax.random.PRNGKey(0)
    kq, kkv, kp = jax.random.split(root, 3)
    q = jax.random.normal(kq, (B, Sq, input_dim), jnp.float32)
    kv = jax.random.normal(kkv, (B, Skv, input_dim), jnp.float32)
    params = init_params(kp, input_dim, hidden_dim)

    ref = cross_attention_ref(q, kv, params, num_heads=num_heads)

    # Exactness check: f32 MXU operands reproduce the reference to 2e-5.
    prep_f32 = prepare_cross_attention_params(params, matmul_dtype=jnp.float32)
    out_f32 = jax.block_until_ready(cross_attention(q, kv, prep_f32, num_heads=num_heads))
    assert out_f32.shape == (B, Sq, hidden_dim)
    assert jnp.allclose(out_f32, ref, atol=2e-5, rtol=2e-5), "f32 mismatch vs reference"

    # Production path: bf16 MXU operands (softmax/normalization stay f32) with
    # approx reciprocal; checked at a correspondingly relaxed tolerance.
    prep_bf16 = prepare_cross_attention_params(params, matmul_dtype=jnp.bfloat16)
    out_bf16 = jax.block_until_ready(cross_attention(q, kv, prep_bf16, num_heads=num_heads))
    assert out_bf16.shape == (B, Sq, hidden_dim)
    assert jnp.allclose(out_bf16, ref, atol=5e-2, rtol=5e-2), "bf16 mismatch vs reference"

    print("KERNEL_OK")
</pallas_src>

<mosaic_0001>
module attributes {stable_mosaic.version = 11 : i64} {
  func.func @_cross_attn_kernel(%arg0: i32, %arg1: memref<1x8x16xf32, #tpu.memory_space<vmem>>, %arg2: memref<1x8x16xf32, #tpu.memory_space<vmem>>, %arg3: memref<16x32xf32, #tpu.memory_space<vmem>>, %arg4: memref<1x32xf32, #tpu.memory_space<vmem>>, %arg5: memref<16x64xf32, #tpu.memory_space<vmem>>, %arg6: memref<1x64xf32, #tpu.memory_space<vmem>>, %arg7: memref<32x128xf32, #tpu.memory_space<vmem>>, %arg8: memref<1x128xf32, #tpu.memory_space<vmem>>, %arg9: memref<1x8x128xf32, #tpu.memory_space<vmem>>) attributes {dimension_semantics = [#tpu.dimension_semantics<parallel>], iteration_bounds = array<i64: 2>, scalar_prefetch = 0 : i64, scratch_operands = 0 : i64, tpu.core_type = #tpu.core_type<tc>, window_params = [{transform_indices = @transform_0, window_bounds = array<i64: 1, 8, 16>}, {transform_indices = @transform_1, window_bounds = array<i64: 1, 8, 16>}, {pipeline_mode = #tpu.pipeline_mode<synchronous>, transform_indices = @transform_2, window_bounds = array<i64: 16, 32>}, {pipeline_mode = #tpu.pipeline_mode<synchronous>, transform_indices = @transform_3, window_bounds = array<i64: 1, 32>}, {pipeline_mode = #tpu.pipeline_mode<synchronous>, transform_indices = @transform_4, window_bounds = array<i64: 16, 64>}, {pipeline_mode = #tpu.pipeline_mode<synchronous>, transform_indices = @transform_5, window_bounds = array<i64: 1, 64>}, {pipeline_mode = #tpu.pipeline_mode<synchronous>, transform_indices = @transform_6, window_bounds = array<i64: 32, 128>}, {pipeline_mode = #tpu.pipeline_mode<synchronous>, transform_indices = @transform_7, window_bounds = array<i64: 1, 128>}, {transform_indices = @transform_8, window_bounds = array<i64: 1, 8, 128>}]} {
    %c0 = arith.constant 0 : index
    %c0_0 = arith.constant 0 : index
    %c0_1 = arith.constant 0 : index
    %0 = vector.load %arg1[%c0, %c0_0, %c0_1] : memref<1x8x16xf32, #tpu.memory_space<vmem>>, vector<1x8x16xf32>
    %1 = vector.shape_cast %0 : vector<1x8x16xf32> to vector<8x16xf32>
    %c0_2 = arith.constant 0 : index
    %c0_3 = arith.constant 0 : index
    %c0_4 = arith.constant 0 : index
    %2 = vector.load %arg2[%c0_2, %c0_3, %c0_4] : memref<1x8x16xf32, #tpu.memory_space<vmem>>, vector<1x8x16xf32>
    %3 = vector.shape_cast %2 : vector<1x8x16xf32> to vector<8x16xf32>
    %c0_5 = arith.constant 0 : index
    %c0_6 = arith.constant 0 : index
    %4 = vector.load %arg3[%c0_5, %c0_6] : memref<16x32xf32, #tpu.memory_space<vmem>>, vector<16x32xf32>
    %cst = arith.constant dense<0.000000e+00> : vector<8x32xf32>
    %5 = tpu.matmul %1, %4, %cst {dimension_numbers = #tpu.dot_dimension_numbers<[1], [0], [0], [1], [0, 0, 1, 1], [], []>} : vector<8x16xf32>, vector<16x32xf32>, vector<8x32xf32> -> vector<8x32xf32>
    %c0_7 = arith.constant 0 : index
    %c0_8 = arith.constant 0 : index
    %6 = vector.load %arg4[%c0_7, %c0_8] : memref<1x32xf32, #tpu.memory_space<vmem>>, vector<1x32xf32>
    %7 = vector.broadcast %6 : vector<1x32xf32> to vector<8x32xf32>
    %8 = arith.addf %5, %7 : vector<8x32xf32>
    %cst_9 = arith.constant 0.353553385 : f32
    %9 = vector.broadcast %cst_9 : f32 to vector<8x32xf32>
    %10 = arith.mulf %8, %9 : vector<8x32xf32>
    %c0_10 = arith.constant 0 : index
    %c0_11 = arith.constant 0 : index
    %11 = vector.load %arg5[%c0_10, %c0_11] : memref<16x64xf32, #tpu.memory_space<vmem>>, vector<16x64xf32>
    %cst_12 = arith.constant dense<0.000000e+00> : vector<8x64xf32>
    %12 = tpu.matmul %3, %11, %cst_12 {dimension_numbers = #tpu.dot_dimension_numbers<[1], [0], [0], [1], [0, 0, 1, 1], [], []>} : vector<8x16xf32>, vector<16x64xf32>, vector<8x64xf32> -> vector<8x64xf32>
    %c0_13 = arith.constant 0 : index
    %c0_14 = arith.constant 0 : index
    %13 = vector.load %arg6[%c0_13, %c0_14] : memref<1x64xf32, #tpu.memory_space<vmem>>, vector<1x64xf32>
    %14 = vector.broadcast %13 : vector<1x64xf32> to vector<8x64xf32>
    %15 = arith.addf %12, %14 : vector<8x64xf32>
    %16 = vector.shape_cast %10 : vector<8x32xf32> to vector<8x4x8xf32>
    %17 = tpu.transpose %16, [1, 0, 2] : vector<8x4x8xf32> -> vector<4x8x8xf32>
    %18 = vector.shape_cast %15 : vector<8x64xf32> to vector<8x8x8xf32>
    %19 = tpu.transpose %18, [1, 0, 2] : vector<8x8x8xf32> -> vector<8x8x8xf32>
    %20 = vector.extract_strided_slice %19 {offsets = [0, 0, 0], sizes = [4, 8, 8], strides = [1, 1, 1]} : vector<8x8x8xf32> to vector<4x8x8xf32>
    %21 = vector.extract_strided_slice %19 {offsets = [4, 0, 0], sizes = [4, 8, 8], strides = [1, 1, 1]} : vector<8x8x8xf32> to vector<4x8x8xf32>
    "tpu.trace_start"() <{level = 10 : i32, message = "hqd,hkd->hqk"}> : () -> ()
    %cst_15 = arith.constant dense<0.000000e+00> : vector<4x8x8xf32>
    %22 = tpu.matmul %17, %20, %cst_15 {dimension_numbers = #tpu.dot_dimension_numbers<[2], [2], [1], [1], [0, 0, 0, 1, 1, 1], [0], [0]>} : vector<4x8x8xf32>, vector<4x8x8xf32>, vector<4x8x8xf32> -> vector<4x8x8xf32>
    "tpu.trace_stop"() : () -> ()
    %cst_16 = arith.constant dense<0xFF800000> : vector<4x8xf32>
    %23 = vector.multi_reduction <maximumf>, %22, %cst_16 [2] : vector<4x8x8xf32> to vector<4x8xf32>
    %24 = vector.shape_cast %23 : vector<4x8xf32> to vector<4x8x1xf32>
    %25 = vector.broadcast %24 : vector<4x8x1xf32> to vector<4x8x8xf32>
    %26 = arith.subf %22, %25 : vector<4x8x8xf32>
    %27 = math.exp %26 : vector<4x8x8xf32>
    %cst_17 = arith.constant dense<0.000000e+00> : vector<4x8xf32>
    %28 = vector.multi_reduction <add>, %27, %cst_17 [2] : vector<4x8x8xf32> to vector<4x8xf32>
    %29 = vector.shape_cast %28 : vector<4x8xf32> to vector<4x8x1xf32>
    "tpu.trace_start"() <{level = 10 : i32, message = "hqk,hkd->hqd"}> : () -> ()
    %cst_18 = arith.constant dense<0.000000e+00> : vector<4x8x8xf32>
    %30 = tpu.matmul %27, %21, %cst_18 {dimension_numbers = #tpu.dot_dimension_numbers<[2], [1], [1], [2], [0, 0, 0, 1, 1, 2], [0], [0]>} : vector<4x8x8xf32>, vector<4x8x8xf32>, vector<4x8x8xf32> -> vector<4x8x8xf32>
    "tpu.trace_stop"() : () -> ()
    %31 = tpu.reciprocal %29 : vector<4x8x1xf32> -> vector<4x8x1xf32>
    %32 = vector.broadcast %31 : vector<4x8x1xf32> to vector<4x8x8xf32>
    %33 = arith.mulf %30, %32 : vector<4x8x8xf32>
    %34 = tpu.transpose %33, [1, 0, 2] : vector<4x8x8xf32> -> vector<8x4x8xf32>
    %35 = vector.shape_cast %34 : vector<8x4x8xf32> to vector<8x32xf32>
    %c0_19 = arith.constant 0 : index
    %c0_20 = arith.constant 0 : index
    %36 = vector.load %arg7[%c0_19, %c0_20] : memref<32x128xf32, #tpu.memory_space<vmem>>, vector<32x128xf32>
    %cst_21 = arith.constant dense<0.000000e+00> : vector<8x128xf32>
    %37 = tpu.matmul %35, %36, %cst_21 {dimension_numbers = #tpu.dot_dimension_numbers<[1], [0], [0], [1], [0, 0, 1, 1], [], []>} : vector<8x32xf32>, vector<32x128xf32>, vector<8x128xf32> -> vector<8x128xf32>
    %c0_22 = arith.constant 0 : index
    %c0_23 = arith.constant 0 : index
    %38 = vector.load %arg8[%c0_22, %c0_23] : memref<1x128xf32, #tpu.memory_space<vmem>>, vector<1x128xf32>
    %39 = vector.broadcast %38 : vector<1x128xf32> to vector<8x128xf32>
    %40 = arith.addf %37, %39 : vector<8x128xf32>
    %c0_24 = arith.constant 0 : index
    %c0_25 = arith.constant 0 : index
    %c0_26 = arith.constant 0 : index
    %41 = vector.load %arg9[%c0_24, %c0_25, %c0_26] : memref<1x8x128xf32, #tpu.memory_space<vmem>>, vector<1x8x128xf32>
    %42 = vector.shape_cast %41 : vector<1x8x128xf32> to vector<8x128xf32>
    %43 = vector.shape_cast %40 : vector<8x128xf32> to vector<1x8x128xf32>
    tpu.vector_store %arg9[%c0_24, %c0_25, %c0_26], %43 {strides = array<i32>} : memref<1x8x128xf32, #tpu.memory_space<vmem>>, vector<1x8x128xf32>,
    return
  }
  func.func @transform_0(%arg0: i32) -> (i32, i32, i32) {
    %c0_i32 = arith.constant 0 : i32
    %c0_i32_0 = arith.constant 0 : i32
    %c0_i32_1 = arith.constant 0 : i32
    return %arg0, %c0_i32, %c0_i32_0 : i32, i32, i32
  }
  func.func @transform_1(%arg0: i32) -> (i32, i32, i32) {
    %c0_i32 = arith.constant 0 : i32
    %c0_i32_0 = arith.constant 0 : i32
    %c0_i32_1 = arith.constant 0 : i32
    return %arg0, %c0_i32, %c0_i32_0 : i32, i32, i32
  }
  func.func @transform_2(%arg0: i32) -> (i32, i32) {
    %c0_i32 = arith.constant 0 : i32
    %c0_i32_0 = arith.constant 0 : i32
    %c0_i32_1 = arith.constant 0 : i32
    return %c0_i32, %c0_i32_0 : i32, i32
  }
  func.func @transform_3(%arg0: i32) -> (i32, i32) {
    %c0_i32 = arith.constant 0 : i32
    %c0_i32_0 = arith.constant 0 : i32
    %c0_i32_1 = arith.constant 0 : i32
    return %c0_i32, %c0_i32_0 : i32, i32
  }
  func.func @transform_4(%arg0: i32) -> (i32, i32) {
    %c0_i32 = arith.constant 0 : i32
    %c0_i32_0 = arith.constant 0 : i32
    %c0_i32_1 = arith.constant 0 : i32
    return %c0_i32, %c0_i32_0 : i32, i32
  }
  func.func @transform_5(%arg0: i32) -> (i32, i32) {
    %c0_i32 = arith.constant 0 : i32
    %c0_i32_0 = arith.constant 0 : i32
    %c0_i32_1 = arith.constant 0 : i32
    return %c0_i32, %c0_i32_0 : i32, i32
  }
  func.func @transform_6(%arg0: i32) -> (i32, i32) {
    %c0_i32 = arith.constant 0 : i32
    %c0_i32_0 = arith.constant 0 : i32
    %c0_i32_1 = arith.constant 0 : i32
    return %c0_i32, %c0_i32_0 : i32, i32
  }
  func.func @transform_7(%arg0: i32) -> (i32, i32) {
    %c0_i32 = arith.constant 0 : i32
    %c0_i32_0 = arith.constant 0 : i32
    %c0_i32_1 = arith.constant 0 : i32
    return %c0_i32, %c0_i32_0 : i32, i32
  }
  func.func @transform_8(%arg0: i32) -> (i32, i32, i32) {
    %c0_i32 = arith.constant 0 : i32
    %c0_i32_0 = arith.constant 0 : i32
    %c0_i32_1 = arith.constant 0 : i32
    return %arg0, %c0_i32, %c0_i32_0 : i32, i32, i32
  }
}

</mosaic_0001>

<llo_original>
// kernel: tpu_custom_call.1
$region0: #{tpu_custom_call.1}
  #allocation0 [shape = 'u32[]', space=smem, size = 0x4, offset = 0x4, fixed_abs, tag = 'smem constant byte address 0x4 - core index']
  #allocation1 [shape = 'u32[144,128]{1,0:T(1,128)}', space=vmem, size = 0x12000, scoped, tag = 'internal scratch']
  %s0 = inlined_call_operand.hbm [shape: f32[2,8,16], index: 0, kind: input, shape index: {}]
  %s1 = inlined_call_operand.hbm [shape: f32[2,8,16], index: 1, kind: input, shape index: {}]
  %s2 = inlined_call_operand.hbm [shape: f32[16,32], index: 2, kind: input, shape index: {}]
  %s3 = inlined_call_operand.vmem [shape: f32[1,32], index: 3, kind: input, shape index: {}]
  %s4 = inlined_call_operand.hbm [shape: f32[16,64], index: 4, kind: input, shape index: {}]
  %s5 = inlined_call_operand.vmem [shape: f32[1,64], index: 5, kind: input, shape index: {}]
  %s6 = inlined_call_operand.hbm [shape: f32[32,128], index: 6, kind: input, shape index: {}]
  %s7 = inlined_call_operand.vmem [shape: f32[1,128], index: 7, kind: input, shape index: {}]
  %s8 = inlined_call_operand.hbm [shape: f32[2,8,128], index: 8, kind: output, shape index: {}]
  %s9 = sld [smem:[#allocation0]]
  $region85: #{tpu_custom_call.1} parent=0
    _
  %s11 = ssub.s32 1, %s9
  %s12 = scalar_select 0, %s11, %s9
  $region1: #{tpu_custom_call.1} parent=0
    #allocation2 [shape = 'u8[8192]{0}', space=vmem, size = 0x2000, scoped, tag = 'input window, operand 0']
    #allocation3 [shape = 's32[2]{0}', space=sflag, size = 0x8, scoped, tag = 'scoped memory for tpu_custom_call.1']
    #allocation4 [shape = 's32[2]{0}', space=sflag, size = 0x8, scoped, tag = 'scoped memory for tpu_custom_call.1']
    #allocation5 [shape = 'u8[8192]{0}', space=vmem, size = 0x2000, scoped, tag = 'input window, operand 1']
    #allocation6 [shape = 's32[2]{0}', space=sflag, size = 0x8, scoped, tag = 'scoped memory for tpu_custom_call.1']
    #allocation7 [shape = 'u8[8192]{0}', space=vmem, size = 0x2000, scoped, tag = 'input window, operand 2, single buffered']
    #allocation8 [shape = 'u8[8192]{0}', space=vmem, size = 0x2000, scoped, tag = 'input window, operand 4, single buffered']
    #allocation9 [shape = 's32[1]{0}', space=sflag, size = 0x4, scoped, tag = 'scoped memory for tpu_custom_call.1']
    #allocation10 [shape = 'u8[16384]{0}', space=vmem, size = 0x4000, scoped, tag = 'input window, operand 6, single buffered']
    #allocation11 [shape = 'u8[8192]{0}', space=vmem, size = 0x2000, scoped, tag = 'output window, operand 0']
    %13 = vsyncpa [#allocation3], 0
    %s14 = scalar_lea.sflag [#allocation3], 1
    %15 = vsyncpa %s14, 0
    %16 = vsyncpa [#allocation6], 0
    %s17 = scalar_lea.sflag [#allocation6], 1
    %18 = vsyncpa %s17, 0
    %19 = vsyncpa [#allocation9], 0
    %20 = vsyncpa [#allocation4], 0
    %s21 = scalar_lea.sflag [#allocation4], 1
    %22 = vsyncpa %s21, 0
    loop: start=0, step=1, limit=4
    $region2: #{tpu_custom_call.1} parent=1 // loop_pre_header
      _
    $region3: #{tpu_custom_call.1} parent=1 // loop_header
      %s24 = sphi 0, %s28
      %p25 = scmp.ge.s32.totalorder %s24, 4
      %s34 = sphi 0, %s36
      %s37 = sphi 0, %s34
      %s38 = sphi 0, %s37
      %s54 = sphi 0, %s38
      %s60 = sphi 0, %s62
      %s63 = sphi 0, %s60
      %s64 = sphi 0, %s63
      %s80 = sphi 0, %s64
      %s84 = sphi 0, %s84
      %s86 = sphi 0, %s84
      %s87 = sphi 0, %s86
      %s101 = sphi 0, %s87
      %s105 = sphi 0, %s105
      %s107 = sphi 0, %s105
      %s108 = sphi 0, %s107
      %s122 = sphi 0, %s108
      %s126 = sphi 0, %s126
      %s128 = sphi 0, %s126
      %s129 = sphi 0, %s128
      %s143 = sphi 0, %s129
      %s147 = sphi 0, %s147
      %s149 = sphi 0, %s147
      %s150 = sphi 0, %s149
      %s164 = sphi 0, %s150
      %s168 = sphi 0, %s168
      %s170 = sphi 0, %s168
      %s171 = sphi 0, %s170
      %s185 = sphi 0, %s171
      %s189 = sphi 0, %s189
      %s191 = sphi 0, %s189
      %s192 = sphi 0, %s191
      %s206 = sphi 0, %s192
      %s212 = sphi 0, %s214
      %s215 = sphi 0, %s212
      %s216 = sphi 0, %s215
      %s232 = sphi 0, %s216
    $region4: #{tpu_custom_call.1} parent=1 // loop_header_branch
      %27 = sbr.rel (%p25) target = $region8
    $region5: #{tpu_custom_call.1} parent=1 // loop_body
      %s29 = ssub.s32 %s24, 1
      %s30 = ssub.s32 %s24, 2
      %s31 = sadd.s32 %s24, 1
      %s32 = ssub.s32 %s24, %s31
      %p33 = scmp.eq.s32.totalorder %s32, 0
      %s35 = sadd.s32 %s34, 1
      %s36 = scalar_select %p33, %s34, %s35
      %p39 = pneg %p33
      %p40 = scmp.eq.s32.totalorder %s24, 1
      %p41 = por %p39, %p40
      %p42 = scmp.ne.s32.totalorder %s34, %s37
      %p43 = scmp.eq.s32.totalorder %s24, 0
      %p44 = por %p42, %p43
      %p45 = scmp.ne.s32.totalorder %s34, %s37
      %p46 = scmp.eq.s32.totalorder %s29, 1
      %p47 = por %p45, %p46
      %p48 = scmp.ne.s32.totalorder %s37, %s38
      %p49 = scmp.eq.s32.totalorder %s29, 0
      %p50 = por %p48, %p49
      %p51 = scmp.ne.s32.totalorder %s37, %s38
      %p52 = scmp.eq.s32.totalorder %s30, 1
      %p53 = por %p51, %p52
      %p55 = scmp.ne.s32.totalorder %s38, %s54
      %p56 = scmp.eq.s32.totalorder %s30, 0
      %p57 = por %p55, %p56
      %s58 = ssub.s32 %s24, %s31
      %p59 = scmp.eq.s32.totalorder %s58, 0
      %s61 = sadd.s32 %s60, 1
      %s62 = scalar_select %p59, %s60, %s61
      %p65 = pneg %p59
      %p66 = scmp.eq.s32.totalorder %s24, 1
      %p67 = por %p65, %p66
      %p68 = scmp.ne.s32.totalorder %s60, %s63
      %p69 = scmp.eq.s32.totalorder %s24, 0
      %p70 = por %p68, %p69
      %p71 = scmp.ne.s32.totalorder %s60, %s63
      %p72 = scmp.eq.s32.totalorder %s29, 1
      %p73 = por %p71, %p72
      %p74 = scmp.ne.s32.totalorder %s63, %s64
      %p75 = scmp.eq.s32.totalorder %s29, 0
      %p76 = por %p74, %p75
      %p77 = scmp.ne.s32.totalorder %s63, %s64
      %p78 = scmp.eq.s32.totalorder %s30, 1
      %p79 = por %p77, %p78
      %p81 = scmp.ne.s32.totalorder %s64, %s80
      %p82 = scmp.eq.s32.totalorder %s30, 0
      %p83 = por %p81, %p82
      %s85 = sadd.s32 %s84, 1
      %p88 = scmp.eq.s32.totalorder %s24, 1
      %p89 = scmp.ne.s32.totalorder %s84, %s86
      %p90 = scmp.eq.s32.totalorder %s24, 0
      %p91 = por %p89, %p90
      %p92 = scmp.ne.s32.totalorder %s84, %s86
      %p93 = scmp.eq.s32.totalorder %s29, 1
      %p94 = por %p92, %p93
      %p95 = scmp.ne.s32.totalorder %s86, %s87
      %p96 = scmp.eq.s32.totalorder %s29, 0
      %p97 = por %p95, %p96
      %p98 = scmp.ne.s32.totalorder %s86, %s87
      %p99 = scmp.eq.s32.totalorder %s30, 1
      %p100 = por %p98, %p99
      %p102 = scmp.ne.s32.totalorder %s87, %s101
      %p103 = scmp.eq.s32.totalorder %s30, 0
      %p104 = por %p102, %p103
      %s106 = sadd.s32 %s105, 1
      %p109 = scmp.eq.s32.totalorder %s24, 1
      %p110 = scmp.ne.s32.totalorder %s105, %s107
      %p111 = scmp.eq.s32.totalorder %s24, 0
      %p112 = por %p110, %p111
      %p113 = scmp.ne.s32.totalorder %s105, %s107
      %p114 = scmp.eq.s32.totalorder %s29, 1
      %p115 = por %p113, %p114
      %p116 = scmp.ne.s32.totalorder %s107, %s108
      %p117 = scmp.eq.s32.totalorder %s29, 0
      %p118 = por %p116, %p117
      %p119 = scmp.ne.s32.totalorder %s107, %s108
      %p120 = scmp.eq.s32.totalorder %s30, 1
      %p121 = por %p119, %p120
      %p123 = scmp.ne.s32.totalorder %s108, %s122
      %p124 = scmp.eq.s32.totalorder %s30, 0
      %p125 = por %p123, %p124
      %s127 = sadd.s32 %s126, 1
      %p130 = scmp.eq.s32.totalorder %s24, 1
      %p131 = scmp.ne.s32.totalorder %s126, %s128
      %p132 = scmp.eq.s32.totalorder %s24, 0
      %p133 = por %p131, %p132
      %p134 = scmp.ne.s32.totalorder %s126, %s128
      %p135 = scmp.eq.s32.totalorder %s29, 1
      %p136 = por %p134, %p135
      %p137 = scmp.ne.s32.totalorder %s128, %s129
      %p138 = scmp.eq.s32.totalorder %s29, 0
      %p139 = por %p137, %p138
      %p140 = scmp.ne.s32.totalorder %s128, %s129
      %p141 = scmp.eq.s32.totalorder %s30, 1
      %p142 = por %p140, %p141
      %p144 = scmp.ne.s32.totalorder %s129, %s143
      %p145 = scmp.eq.s32.totalorder %s30, 0
      %p146 = por %p144, %p145
      %s148 = sadd.s32 %s147, 1
      %p151 = scmp.eq.s32.totalorder %s24, 1
      %p152 = scmp.ne.s32.totalorder %s147, %s149
      %p153 = scmp.eq.s32.totalorder %s24, 0
      %p154 = por %p152, %p153
      %p155 = scmp.ne.s32.totalorder %s147, %s149
      %p156 = scmp.eq.s32.totalorder %s29, 1
      %p157 = por %p155, %p156
      %p158 = scmp.ne.s32.totalorder %s149, %s150
      %p159 = scmp.eq.s32.totalorder %s29, 0
      %p160 = por %p158, %p159
      %p161 = scmp.ne.s32.totalorder %s149, %s150
      %p162 = scmp.eq.s32.totalorder %s30, 1
      %p163 = por %p161, %p162
      %p165 = scmp.ne.s32.totalorder %s150, %s164
      %p166 = scmp.eq.s32.totalorder %s30, 0
      %p167 = por %p165, %p166
      %s169 = sadd.s32 %s168, 1
      %p172 = scmp.eq.s32.totalorder %s24, 1
      %p173 = scmp.ne.s32.totalorder %s168, %s170
      %p174 = scmp.eq.s32.totalorder %s24, 0
      %p175 = por %p173, %p174
      %p176 = scmp.ne.s32.totalorder %s168, %s170
      %p177 = scmp.eq.s32.totalorder %s29, 1
      %p178 = por %p176, %p177
      %p179 = scmp.ne.s32.totalorder %s170, %s171
      %p180 = scmp.eq.s32.totalorder %s29, 0
      %p181 = por %p179, %p180
      %p182 = scmp.ne.s32.totalorder %s170, %s171
      %p183 = scmp.eq.s32.totalorder %s30, 1
      %p184 = por %p182, %p183
      %p186 = scmp.ne.s32.totalorder %s171, %s185
      %p187 = scmp.eq.s32.totalorder %s30, 0
      %p188 = por %p186, %p187
      %s190 = sadd.s32 %s189, 1
      %p193 = scmp.eq.s32.totalorder %s24, 1
      %p194 = scmp.ne.s32.totalorder %s189, %s191
      %p195 = scmp.eq.s32.totalorder %s24, 0
      %p196 = por %p194, %p195
      %p197 = scmp.ne.s32.totalorder %s189, %s191
      %p198 = scmp.eq.s32.totalorder %s29, 1
      %p199 = por %p197, %p198
      %p200 = scmp.ne.s32.totalorder %s191, %s192
      %p201 = scmp.eq.s32.totalorder %s29, 0
      %p202 = por %p200, %p201
      %p203 = scmp.ne.s32.totalorder %s191, %s192
      %p204 = scmp.eq.s32.totalorder %s30, 1
      %p205 = por %p203, %p204
      %p207 = scmp.ne.s32.totalorder %s192, %s206
      %p208 = scmp.eq.s32.totalorder %s30, 0
      %p209 = por %p207, %p208
      %s210 = ssub.s32 %s24, %s31
      %p211 = scmp.eq.s32.totalorder %s210, 0
      %s213 = sadd.s32 %s212, 1
      %s214 = scalar_select %p211, %s212, %s213
      %p217 = pneg %p211
      %p218 = scmp.eq.s32.totalorder %s24, 1
      %p219 = por %p217, %p218
      %p220 = scmp.ne.s32.totalorder %s212, %s215
      %p221 = scmp.eq.s32.totalorder %s24, 0
      %p222 = por %p220, %p221
      %p223 = scmp.ne.s32.totalorder %s212, %s215
      %p224 = scmp.eq.s32.totalorder %s29, 1
      %p225 = por %p223, %p224
      %p226 = scmp.ne.s32.totalorder %s215, %s216
      %p227 = scmp.eq.s32.totalorder %s29, 0
      %p228 = por %p226, %p227
      %p229 = scmp.ne.s32.totalorder %s215, %s216
      %p230 = scmp.eq.s32.totalorder %s30, 1
      %p231 = por %p229, %p230
      %p233 = scmp.ne.s32.totalorder %s216, %s232
      %p234 = scmp.eq.s32.totalorder %s30, 0
      %p235 = por %p233, %p234
      %p236 = scmp.le.s32.totalorder 1, %s24
      %p237 = scmp.lt.s32.totalorder %s24, 3
      %p238 = pnand %p236, %p237
      %p239 = pneg %p238
      // Predicated region
      $region9: #{tpu_custom_call.1} parent=5 // pred_check
        _
      $region10: #{tpu_custom_call.1} parent=5 // pred_check_branch
        %241 = sbr.rel (%p238) target = $region12
      $region11: #{tpu_custom_call.1} parent=5 // pred_region
        %s242 = ssub.s32 %s24, 1
        // Predicated region
        $region13: #{tpu_custom_call.1} parent=11 // pred_check
          %p243 = pneg %p97
        $region14: #{tpu_custom_call.1} parent=11 // pred_check_branch
          %245 = sbr.rel (%p243) target = $region16
        $region15: #{tpu_custom_call.1} parent=11 // pred_region
          %s247 = ssub.s32 256, 256
          %248 = vsyncadd [#allocation6], %s247
          %s249 = sshll.u32 [#allocation7], 4
          %s250 = int_to_ptr.vmem [resolvable:$true] %s249
          %255 = dma.hbm_to_vmem [thread:$0]  %s2, 256, %s250, [#allocation6], 128, 128, 8
        $region16: #{tpu_custom_call.1} parent=11 // pred_fallthru
          _
        // Predicated region
        $region17: #{tpu_custom_call.1} parent=11 // pred_check
          %p256 = pneg %p118
        $region18: #{tpu_custom_call.1} parent=11 // pred_check_branch
          %258 = sbr.rel (%p256) target = $region20
        $region19: #{tpu_custom_call.1} parent=11 // pred_region
          _
        $region20: #{tpu_custom_call.1} parent=11 // pred_fallthru
          _
        // Predicated region
        $region21: #{tpu_custom_call.1} parent=11 // pred_check
          %p259 = pneg %p139
        $region22: #{tpu_custom_call.1} parent=11 // pred_check_branch
          %261 = sbr.rel (%p259) target = $region24
        $region23: #{tpu_custom_call.1} parent=11 // pred_region
          %s263 = ssub.s32 256, 256
          %264 = vsyncadd [#allocation9], %s263
          %s265 = sshll.u32 [#allocation8], 4
          %s266 = int_to_ptr.vmem [resolvable:$true] %s265
          %271 = dma.hbm_to_vmem [thread:$0]  %s4, 256, %s266, [#allocation9], 128, 128, 8
        $region24: #{tpu_custom_call.1} parent=11 // pred_fallthru
          _
        // Predicated region
        $region25: #{tpu_custom_call.1} parent=11 // pred_check
          %p272 = pneg %p160
        $region26: #{tpu_custom_call.1} parent=11 // pred_check_branch
          %274 = sbr.rel (%p272) target = $region28
        $region27: #{tpu_custom_call.1} parent=11 // pred_region
          _
        $region28: #{tpu_custom_call.1} parent=11 // pred_fallthru
          _
        // Predicated region
        $region29: #{tpu_custom_call.1} parent=11 // pred_check
          %p275 = pneg %p181
        $region30: #{tpu_custom_call.1} parent=11 // pred_check_branch
          %277 = sbr.rel (%p275) target = $region32
        $region31: #{tpu_custom_call.1} parent=11 // pred_region
          %s279 = ssub.s32 512, 512
          %280 = vsyncadd [#allocation9], %s279
          %s281 = sshll.u32 [#allocation10], 4
          %s282 = int_to_ptr.vmem [resolvable:$true] %s281
          %287 = dma.hbm_to_vmem [thread:$0]  %s6, 512, %s282, [#allocation9], 128, 128, 8
        $region32: #{tpu_custom_call.1} parent=11 // pred_fallthru
          _
        // Predicated region
        $region33: #{tpu_custom_call.1} parent=11 // pred_check
          %p288 = pneg %p202
        $region34: #{tpu_custom_call.1} parent=11 // pred_check_branch
          %290 = sbr.rel (%p288) target = $region36
        $region35: #{tpu_custom_call.1} parent=11 // pred_region
          _
        $region36: #{tpu_custom_call.1} parent=11 // pred_fallthru
          _
      $region12: #{tpu_custom_call.1} parent=5 // pred_fallthru
        _
      %p291 = scmp.lt.s32.totalorder %s24, 2
      // Predicated region
      $region37: #{tpu_custom_call.1} parent=5 // pred_check
        %p292 = pneg %p291
      $region38: #{tpu_custom_call.1} parent=5 // pred_check_branch
        %294 = sbr.rel (%p292) target = $region40
      $region39: #{tpu_custom_call.1} parent=5 // pred_region
        // Predicated region
        $region41: #{tpu_custom_call.1} parent=39 // pred_check
          %p295 = pneg %p44
        $region42: #{tpu_custom_call.1} parent=39 // pred_check_branch
          %297 = sbr.rel (%p295) target = $region44
        $region43: #{tpu_custom_call.1} parent=39 // pred_region
          %s298 = sand.u32 %s34, 1
          %s299 = scalar_lea.sflag [#allocation3], %s298
          %s300 = sand.u32 %s34, 1
          %s301 = smul.addr %s300, 8
          %s302 = scalar_lea.vmem [#allocation2], %s301
          %s304 = ssub.s32 128, 128
          %305 = vsyncadd %s299, %s304
          %s306 = smul.addr %s24, 128
          %s307 = scalar_lea.hbm %s0, %s306
          %s309 = sshll.u32 %s302, 4
          %s310 = int_to_ptr.vmem [resolvable:$true] %s309
          %312 = dma.hbm_to_vmem [thread:$0]  %s307, 128, %s310, %s299
        $region44: #{tpu_custom_call.1} parent=39 // pred_fallthru
          _
        // Predicated region
        $region45: #{tpu_custom_call.1} parent=39 // pred_check
          %p313 = pneg %p70
        $region46: #{tpu_custom_call.1} parent=39 // pred_check_branch
          %315 = sbr.rel (%p313) target = $region48
        $region47: #{tpu_custom_call.1} parent=39 // pred_region
          %s316 = sand.u32 %s24, 1
          %s317 = scalar_lea.sflag [#allocation6], %s316
          %s318 = sand.u32 %s60, 1
          %s319 = smul.addr %s318, 8
          %s320 = scalar_lea.vmem [#allocation5], %s319
          %s322 = ssub.s32 128, 128
          %323 = vsyncadd %s317, %s322
          %s324 = smul.addr %s24, 128
          %s325 = scalar_lea.hbm %s1, %s324
          %s327 = sshll.u32 %s320, 4
          %s328 = int_to_ptr.vmem [resolvable:$true] %s327
          %330 = dma.hbm_to_vmem [thread:$0]  %s325, 128, %s328, %s317
        $region48: #{tpu_custom_call.1} parent=39 // pred_fallthru
          _
      $region40: #{tpu_custom_call.1} parent=5 // pred_fallthru
        _
      %p331 = scmp.le.s32.totalorder 1, %s24
      %p332 = scmp.lt.s32.totalorder %s24, 3
      %p333 = pnand %p331, %p332
      %p334 = pneg %p333
      // Predicated region
      $region49: #{tpu_custom_call.1} parent=5 // pred_check
        _
      $region50: #{tpu_custom_call.1} parent=5 // pred_check_branch
        %336 = sbr.rel (%p333) target = $region52
      $region51: #{tpu_custom_call.1} parent=5 // pred_region
        %s337 = ssub.s32 %s24, 1
        %s338 = sand.u32 %s37, 1
        %s339 = scalar_lea.sflag [#allocation3], %s338
        %s340 = sand.u32 %s37, 1
        %s341 = smul.addr %s340, 8
        %s342 = scalar_lea.vmem [#allocation2], %s341
        // Predicated region
        $region53: #{tpu_custom_call.1} parent=51 // pred_check
          %p343 = pneg %p50
        $region54: #{tpu_custom_call.1} parent=51 // pred_check_branch
          %345 = sbr.rel (%p343) target = $region56
        $region55: #{tpu_custom_call.1} parent=51 // pred_region
          %346 = dma.done %s339, 128
        $region56: #{tpu_custom_call.1} parent=51 // pred_fallthru
          _
        %s347 = sand.u32 %s29, 1
        %s348 = scalar_lea.sflag [#allocation6], %s347
        %s349 = sand.u32 %s63, 1
        %s350 = smul.addr %s349, 8
        %s351 = scalar_lea.vmem [#allocation5], %s350
        // Predicated region
        $region57: #{tpu_custom_call.1} parent=51 // pred_check
          %p352 = pneg %p76
        $region58: #{tpu_custom_call.1} parent=51 // pred_check_branch
          %354 = sbr.rel (%p352) target = $region60
        $region59: #{tpu_custom_call.1} parent=51 // pred_region
          %355 = dma.done %s348, 128
        $region60: #{tpu_custom_call.1} parent=51 // pred_fallthru
          _
        // Predicated region
        $region61: #{tpu_custom_call.1} parent=51 // pred_check
          %p356 = pneg %p97
        $region62: #{tpu_custom_call.1} parent=51 // pred_check_branch
          %358 = sbr.rel (%p356) target = $region64
        $region63: #{tpu_custom_call.1} parent=51 // pred_region
          %359 = dma.done [#allocation6], 256
        $region64: #{tpu_custom_call.1} parent=51 // pred_fallthru
          _
        // Predicated region
        $region65: #{tpu_custom_call.1} parent=51 // pred_check
          %p360 = pneg %p139
        $region66: #{tpu_custom_call.1} parent=51 // pred_check_branch
          %362 = sbr.rel (%p360) target = $region68
        $region67: #{tpu_custom_call.1} parent=51 // pred_region
          %363 = dma.done [#allocation9], 256
        $region68: #{tpu_custom_call.1} parent=51 // pred_fallthru
          _
        // Predicated region
        $region69: #{tpu_custom_call.1} parent=51 // pred_check
          %p364 = pneg %p181
        $region70: #{tpu_custom_call.1} parent=51 // pred_check_branch
          %366 = sbr.rel (%p364) target = $region72
        $region71: #{tpu_custom_call.1} parent=51 // pred_region
          %367 = dma.done [#allocation9], 512
        $region72: #{tpu_custom_call.1} parent=51 // pred_fallthru
          _
        %s368 = sand.u32 %s37, 1
        %s369 = scalar_lea.sflag [#allocation3], %s368
        %s370 = sand.u32 %s37, 1
        %s371 = smul.addr %s370, 8
        %s372 = scalar_lea.vmem [#allocation2], %s371
        %p373 = pneg %p50
        %p374 = pneg %p47
        %s375 = sand.u32 %s29, 1
        %s376 = scalar_lea.sflag [#allocation6], %s375
        %s377 = sand.u32 %s63, 1
        %s378 = smul.addr %s377, 8
        %s379 = scalar_lea.vmem [#allocation5], %s378
        %p380 = pneg %p76
        %p381 = pneg %p73
        %p382 = pneg %p97
        %p383 = pneg %p94
        %p384 = pneg %p118
        %p385 = pneg %p115
        %p386 = pneg %p139
        %p387 = pneg %p136
        %p388 = pneg %p160
        %p389 = pneg %p157
        %p390 = pneg %p181
        %p391 = pneg %p178
        %p392 = pneg %p202
        %p393 = pneg %p199
        %p394 = pneg %p228
        %p395 = pneg %p225
        %s396 = sand.u32 %s215, 1
        %s397 = scalar_lea.sflag [#allocation4], %s396
        %s398 = sand.u32 %s215, 1
        %s399 = smul.addr %s398, 8
        %s400 = scalar_lea.vmem [#allocation11], %s399
        %v401 = vld [vmem:[%s342] sm:$0xff]
        %v402 = vld [vmem:[%s351] sm:$0xff]
        %v403 = vld [vmem:[#allocation7] sm:$0xff]
        %v404 = vld [vmem:[#allocation7 + $0x8] sm:$0xff]
        %v405 = vld [vmem:[%s3] sm:$0x1]
        %v407 = vlaneseq
        %v408 = vshrl.u32 %v407, 7
        %v409 = vsub.s32 0, %v408
        %v410 = vrot.slane %v405, %v409
        %vm412 = vcmask 130048
        %v414 = vsel %vm412, %v401, 0
        %416 = vmatprep.subr.mxu0 0.0
        %417 = vmatpush1.msra.mxu0 0.0
        %418 = vmatprep.subr.mxu0 0.0
        %419 = vmatpush1.msra.mxu0 0.0
        %420 = vmatprep.subr.mxu0 0.0
        %421 = vmatpush1.msra.mxu0 0.0
        %422 = vmatprep.subr.mxu0 0.0
        %423 = vmatpush1.msra.mxu0 0.0
        %424 = vmatprep.subr.mxu0 0.0
        %425 = vmatpush1.msra.mxu0 0.0
        %426 = vmatprep.subr.mxu0 0.0
        %427 = vmatpush1.msra.mxu0 0.0
        %428 = vmatprep.subr.mxu0 0.0
        %429 = vmatpush1.msra.mxu0 0.0
        %430 = vmatprep.subr.mxu0 0.0
        %431 = vmatpush1.msra.mxu0 0.0
        %432 = vmatprep.subr.mxu0 0.0
        %433 = vmatpush1.msra.mxu0 0.0
        %434 = vmatprep.subr.mxu0 0.0
        %435 = vmatpush1.msra.mxu0 0.0
        %436 = vmatprep.subr.mxu0 0.0
        %437 = vmatpush1.msra.mxu0 0.0
        %438 = vmatprep.subr.mxu0 0.0
        %439 = vmatpush1.msra.mxu0 0.0
        %440 = vmatprep.subr.mxu0 0.0
        %441 = vmatpush1.msra.mxu0 0.0
        %442 = vmatprep.subr.mxu0 0.0
        %443 = vmatpush1.msra.mxu0 0.0
        %444 = vmatprep.subr.mxu0 0.0
        %445 = vmatpush1.msra.mxu0 %v404
        %446 = vmatprep.subr.mxu0 0.0
        %447 = vmatpush1.msra.mxu0 %v403
        %448 = vmatprep.subr.mxu0 0.0
        %449 = vmatpush2.msra.mxu0 0.0
        %450 = vmatprep.subr.mxu0 0.0
        %451 = vmatpush2.msra.mxu0 0.0
        %452 = vmatprep.subr.mxu0 0.0
        %453 = vmatpush2.msra.mxu0 0.0
        %454 = vmatprep.subr.mxu0 0.0
        %455 = vmatpush2.msra.mxu0 0.0
        %456 = vmatprep.subr.mxu0 0.0
        %457 = vmatpush2.msra.mxu0 0.0
        %458 = vmatprep.subr.mxu0 0.0
        %459 = vmatpush2.msra.mxu0 0.0
        %460 = vmatprep.subr.mxu0 0.0
        %461 = vmatpush2.msra.mxu0 0.0
        %462 = vmatprep.subr.mxu0 0.0
        %463 = vmatpush2.msra.mxu0 0.0
        %464 = vmatprep.subr.mxu0 0.0
        %465 = vmatpush2.msra.mxu0 0.0
        %466 = vmatprep.subr.mxu0 0.0
        %467 = vmatpush2.msra.mxu0 0.0
        %468 = vmatprep.subr.mxu0 0.0
        %469 = vmatpush2.msra.mxu0 0.0
        %470 = vmatprep.subr.mxu0 0.0
        %471 = vmatpush2.msra.mxu0 0.0
        %472 = vmatprep.subr.mxu0 0.0
        %473 = vmatpush2.msra.mxu0 0.0
        %474 = vmatprep.subr.mxu0 0.0
        %475 = vmatpush2.msra.mxu0 0.0
        %476 = vmatprep.subr.mxu0 0.0
        %477 = vmatpush2.msra.mxu0 0.0
        %478 = vmatprep.subr.mxu0 0.0
        %479 = vmatpush2.msra.mxu0 0.0
        %480 = vmatprep.mubr.f32.mxu0 0.0
        %481 = vmatmul.mubr.f32.gmra.mxu0 %v414
        %v482 = vpop.f32.mrf.mxu0
        %v483 = vadd.f32 %v410, %v482
        %v484 = vpop.f32.mrf.mxu0
        %485 = vdwg.mxu0
        %v486 = vmul.f32 %v483, 0.35355338
        %v487 = vld [vmem:[#allocation8] sm:$0xff]
        %v488 = vld [vmem:[#allocation8 + $0x8] sm:$0xff]
        %v489 = vld [vmem:[%s5] sm:$0x1]
        %v491 = vlaneseq
        %v492 = vshrl.u32 %v491, 7
        %v493 = vsub.s32 0, %v492
        %v494 = vrot.slane %v489, %v493
        %v497 = vsel %vm412, %v402, 0
        %499 = vmatprep.subr.mxu0 0.0
        %500 = vmatpush1.msra.mxu0 0.0
        %501 = vmatprep.subr.mxu0 0.0
        %502 = vmatpush1.msra.mxu0 0.0
        %503 = vmatprep.subr.mxu0 0.0
        %504 = vmatpush1.msra.mxu0 0.0
        %505 = vmatprep.subr.mxu0 0.0
        %506 = vmatpush1.msra.mxu0 0.0
        %507 = vmatprep.subr.mxu0 0.0
        %508 = vmatpush1.msra.mxu0 0.0
        %509 = vmatprep.subr.mxu0 0.0
        %510 = vmatpush1.msra.mxu0 0.0
        %511 = vmatprep.subr.mxu0 0.0
        %512 = vmatpush1.msra.mxu0 0.0
        %513 = vmatprep.subr.mxu0 0.0
        %514 = vmatpush1.msra.mxu0 0.0
        %515 = vmatprep.subr.mxu0 0.0
        %516 = vmatpush1.msra.mxu0 0.0
        %517 = vmatprep.subr.mxu0 0.0
        %518 = vmatpush1.msra.mxu0 0.0
        %519 = vmatprep.subr.mxu0 0.0
        %520 = vmatpush1.msra.mxu0 0.0
        %521 = vmatprep.subr.mxu0 0.0
        %522 = vmatpush1.msra.mxu0 0.0
        %523 = vmatprep.subr.mxu0 0.0
        %524 = vmatpush1.msra.mxu0 0.0
        %525 = vmatprep.subr.mxu0 0.0
        %526 = vmatpush1.msra.mxu0 0.0
        %527 = vmatprep.subr.mxu0 0.0
        %528 = vmatpush1.msra.mxu0 %v488
        %529 = vmatprep.subr.mxu0 0.0
        %530 = vmatpush1.msra.mxu0 %v487
        %531 = vmatprep.subr.mxu0 0.0
        %532 = vmatpush2.msra.mxu0 0.0
        %533 = vmatprep.subr.mxu0 0.0
        %534 = vmatpush2.msra.mxu0 0.0
        %535 = vmatprep.subr.mxu0 0.0
        %536 = vmatpush2.msra.mxu0 0.0
        %537 = vmatprep.subr.mxu0 0.0
        %538 = vmatpush2.msra.mxu0 0.0
        %539 = vmatprep.subr.mxu0 0.0
        %540 = vmatpush2.msra.mxu0 0.0
        %541 = vmatprep.subr.mxu0 0.0
        %542 = vmatpush2.msra.mxu0 0.0
        %543 = vmatprep.subr.mxu0 0.0
        %544 = vmatpush2.msra.mxu0 0.0
        %545 = vmatprep.subr.mxu0 0.0
        %546 = vmatpush2.msra.mxu0 0.0
        %547 = vmatprep.subr.mxu0 0.0
        %548 = vmatpush2.msra.mxu0 0.0
        %549 = vmatprep.subr.mxu0 0.0
        %550 = vmatpush2.msra.mxu0 0.0
        %551 = vmatprep.subr.mxu0 0.0
        %552 = vmatpush2.msra.mxu0 0.0
        %553 = vmatprep.subr.mxu0 0.0
        %554 = vmatpush2.msra.mxu0 0.0
        %555 = vmatprep.subr.mxu0 0.0
        %556 = vmatpush2.msra.mxu0 0.0
        %557 = vmatprep.subr.mxu0 0.0
        %558 = vmatpush2.msra.mxu0 0.0
        %559 = vmatprep.subr.mxu0 0.0
        %560 = vmatpush2.msra.mxu0 0.0
        %561 = vmatprep.subr.mxu0 0.0
        %562 = vmatpush2.msra.mxu0 0.0
        %563 = vmatprep.mubr.f32.mxu0 0.0
        %564 = vmatmul.mubr.f32.gmra.mxu0 %v497
        %v565 = vpop.f32.mrf.mxu0
        %v566 = vadd.f32 %v494, %v565
        %v567 = vpop.f32.mrf.mxu0
        %568 = vdwg.mxu0
        %570 = vrot.lane.b32.xlu0 %v486, 120
        %v571 = vpop.permute.xlu0 %570
        %573 = vrot.lane.b32.xlu0 %v486, 112
        %v574 = vpop.permute.xlu0 %573
        %576 = vrot.lane.b32.xlu0 %v486, 104
        %v577 = vpop.permute.xlu0 %576
        %v579 = vcombine.low %v486, %v574
        %v580 = vcombine.high %v486, %v574
        %v582 = vunpack.c.l.s4 1983009808
        %v583 = vunpack.c.0.s8 %v582
        %v584 = vlaneseq
        %v585 = vshrl.u32 %v584, 7
        %v586 = vsub.s32 %v583, %v585
        %v587 = vrot.slane %v579, %v586
        %v589 = vunpack.c.l.s4 1983009808
        %v590 = vunpack.c.0.s8 %v589
        %v591 = vlaneseq
        %v592 = vshrl.u32 %v591, 7
        %v593 = vsub.s32 %v590, %v592
        %v594 = vrot.slane %v580, %v593
        %v595 = vcombine.low %v571, %v577
        %v596 = vcombine.high %v571, %v577
        %v598 = vunpack.c.l.s4 1983009808
        %v599 = vunpack.c.0.s8 %v598
        %v600 = vlaneseq
        %v601 = vshrl.u32 %v600, 7
        %v602 = vsub.s32 %v599, %v601
        %v603 = vrot.slane %v595, %v602
        %v605 = vunpack.c.l.s4 1983009808
        %v606 = vunpack.c.0.s8 %v605
        %v607 = vlaneseq
        %v608 = vshrl.u32 %v607, 7
        %v609 = vsub.s32 %v606, %v608
        %v610 = vrot.slane %v596, %v609
        %v611 = vcombine.low %v587, %v603
        %v612 = vcombine.high %v587, %v603
        %v614 = vunpack.c.l.s4 1934713408
        %v615 = vunpack.c.0.s8 %v614
        %v616 = vlaneseq
        %v617 = vshrl.u32 %v616, 7
        %v618 = vsub.s32 %v615, %v617
        %v619 = vrot.slane %v611, %v618
        %v621 = vunpack.c.l.s4 1934713408
        %v622 = vunpack.c.0.s8 %v621
        %v623 = vlaneseq
        %v624 = vshrl.u32 %v623, 7
        %v625 = vsub.s32 %v622, %v624
        %v626 = vrot.slane %v612, %v625
        %v627 = vcombine.low %v594, %v610
        %v628 = vcombine.high %v594, %v610
        %v630 = vunpack.c.l.s4 1934713408
        %v631 = vunpack.c.0.s8 %v630
        %v632 = vlaneseq
        %v633 = vshrl.u32 %v632, 7
        %v634 = vsub.s32 %v631, %v633
        %v635 = vrot.slane %v627, %v634
        %v637 = vunpack.c.l.s4 1934713408
        %v638 = vunpack.c.0.s8 %v637
        %v639 = vlaneseq
        %v640 = vshrl.u32 %v639, 7
        %v641 = vsub.s32 %v638, %v640
        %v642 = vrot.slane %v628, %v641
        %v643 = vcombine.high %v619, 0.0
        %v644 = vcombine.high %v626, 0.0
        %v645 = vcombine.high %v635, 0.0
        %v646 = vcombine.high %v642, 0.0
        %v647 = vcombine.low %v619, %v626
        %v649 = vunpack.c.l.s4 1983009808
        %v650 = vunpack.c.0.s8 %v649
        %v651 = vlaneseq
        %v652 = vshrl.u32 %v651, 7
        %v653 = vsub.s32 %v650, %v652
        %v654 = vrot.slane %v647, %v653
        %v655 = vcombine.low %v643, %v644
        %v657 = vunpack.c.l.s4 1983009808
        %v658 = vunpack.c.0.s8 %v657
        %v659 = vlaneseq
        %v660 = vshrl.u32 %v659, 7
        %v661 = vsub.s32 %v658, %v660
        %v662 = vrot.slane %v655, %v661
        %v663 = vcombine.low %v635, %v642
        %v665 = vunpack.c.l.s4 1983009808
        %v666 = vunpack.c.0.s8 %v665
        %v667 = vlaneseq
        %v668 = vshrl.u32 %v667, 7
        %v669 = vsub.s32 %v666, %v668
        %v670 = vrot.slane %v663, %v669
        %v671 = vcombine.low %v645, %v646
        %v673 = vunpack.c.l.s4 1983009808
        %v674 = vunpack.c.0.s8 %v673
        %v675 = vlaneseq
        %v676 = vshrl.u32 %v675, 7
        %v677 = vsub.s32 %v674, %v676
        %v678 = vrot.slane %v671, %v677
        %v679 = vcombine.low %v654, %v662
        %v680 = vcombine.high %v654, %v662
        %v682 = vunpack.c.l.s4 1934713408
        %v683 = vunpack.c.0.s8 %v682
        %v684 = vlaneseq
        %v685 = vshrl.u32 %v684, 7
        %v686 = vsub.s32 %v683, %v685
        %v687 = vrot.slane %v679, %v686
        %v689 = vunpack.c.l.s4 1934713408
        %v690 = vunpack.c.0.s8 %v689
        %v691 = vlaneseq
        %v692 = vshrl.u32 %v691, 7
        %v693 = vsub.s32 %v690, %v692
        %v694 = vrot.slane %v680, %v693
        %v695 = vcombine.low %v670, %v678
        %v696 = vcombine.high %v670, %v678
        %v698 = vunpack.c.l.s4 1934713408
        %v699 = vunpack.c.0.s8 %v698
        %v700 = vlaneseq
        %v701 = vshrl.u32 %v700, 7
        %v702 = vsub.s32 %v699, %v701
        %v703 = vrot.slane %v695, %v702
        %v705 = vunpack.c.l.s4 1934713408
        %v706 = vunpack.c.0.s8 %v705
        %v707 = vlaneseq
        %v708 = vshrl.u32 %v707, 7
        %v709 = vsub.s32 %v706, %v708
        %v710 = vrot.slane %v696, %v709
        %v711 = vcombine.low %v687, %v703
        %v712 = vcombine.high %v687, %v703
        %v713 = vcombine.low %v694, %v710
        %v714 = vcombine.high %v694, %v710
        %716 = vrot.lane.b32.xlu0 %v566, 120
        %v717 = vpop.permute.xlu0 %716
        %719 = vrot.lane.b32.xlu0 %v566, 112
        %v720 = vpop.permute.xlu0 %719
        %722 = vrot.lane.b32.xlu0 %v566, 104
        %v723 = vpop.permute.xlu0 %722
        %725 = vrot.lane.b32.xlu0 %v566, 96
        %v726 = vpop.permute.xlu0 %725
        %728 = vrot.lane.b32.xlu0 %v566, 88
        %v729 = vpop.permute.xlu0 %728
        %731 = vrot.lane.b32.xlu0 %v566, 80
        %v732 = vpop.permute.xlu0 %731
        %734 = vrot.lane.b32.xlu0 %v566, 72
        %v735 = vpop.permute.xlu0 %734
        %v737 = vcombine.low %v566, %v720
        %v738 = vcombine.high %v566, %v720
        %v740 = vunpack.c.l.s4 1983009808
        %v741 = vunpack.c.0.s8 %v740
        %v742 = vlaneseq
        %v743 = vshrl.u32 %v742, 7
        %v744 = vsub.s32 %v741, %v743
        %v745 = vrot.slane %v737, %v744
        %v747 = vunpack.c.l.s4 1983009808
        %v748 = vunpack.c.0.s8 %v747
        %v749 = vlaneseq
        %v750 = vshrl.u32 %v749, 7
        %v751 = vsub.s32 %v748, %v750
        %v752 = vrot.slane %v738, %v751
        %v753 = vcombine.low %v717, %v723
        %v754 = vcombine.high %v717, %v723
        %v756 = vunpack.c.l.s4 1983009808
        %v757 = vunpack.c.0.s8 %v756
        %v758 = vlaneseq
        %v759 = vshrl.u32 %v758, 7
        %v760 = vsub.s32 %v757, %v759
        %v761 = vrot.slane %v753, %v760
        %v763 = vunpack.c.l.s4 1983009808
        %v764 = vunpack.c.0.s8 %v763
        %v765 = vlaneseq
        %v766 = vshrl.u32 %v765, 7
        %v767 = vsub.s32 %v764, %v766
        %v768 = vrot.slane %v754, %v767
        %v769 = vcombine.low %v726, %v732
        %v770 = vcombine.high %v726, %v732
        %v772 = vunpack.c.l.s4 1983009808
        %v773 = vunpack.c.0.s8 %v772
        %v774 = vlaneseq
        %v775 = vshrl.u32 %v774, 7
        %v776 = vsub.s32 %v773, %v775
        %v777 = vrot.slane %v769, %v776
        %v779 = vunpack.c.l.s4 1983009808
        %v780 = vunpack.c.0.s8 %v779
        %v781 = vlaneseq
        %v782 = vshrl.u32 %v781, 7
        %v783 = vsub.s32 %v780, %v782
        %v784 = vrot.slane %v770, %v783
        %v785 = vcombine.low %v729, %v735
        %v786 = vcombine.high %v729, %v735
        %v788 = vunpack.c.l.s4 1983009808
        %v789 = vunpack.c.0.s8 %v788
        %v790 = vlaneseq
        %v791 = vshrl.u32 %v790, 7
        %v792 = vsub.s32 %v789, %v791
        %v793 = vrot.slane %v785, %v792
        %v795 = vunpack.c.l.s4 1983009808
        %v796 = vunpack.c.0.s8 %v795
        %v797 = vlaneseq
        %v798 = vshrl.u32 %v797, 7
        %v799 = vsub.s32 %v796, %v798
        %v800 = vrot.slane %v786, %v799
        %v801 = vcombine.low %v745, %v761
        %v802 = vcombine.high %v745, %v761
        %v804 = vunpack.c.l.s4 1934713408
        %v805 = vunpack.c.0.s8 %v804
        %v806 = vlaneseq
        %v807 = vshrl.u32 %v806, 7
        %v808 = vsub.s32 %v805, %v807
        %v809 = vrot.slane %v801, %v808
        %v811 = vunpack.c.l.s4 1934713408
        %v812 = vunpack.c.0.s8 %v811
        %v813 = vlaneseq
        %v814 = vshrl.u32 %v813, 7
        %v815 = vsub.s32 %v812, %v814
        %v816 = vrot.slane %v802, %v815
        %v817 = vcombine.low %v752, %v768
        %v818 = vcombine.high %v752, %v768
        %v820 = vunpack.c.l.s4 1934713408
        %v821 = vunpack.c.0.s8 %v820
        %v822 = vlaneseq
        %v823 = vshrl.u32 %v822, 7
        %v824 = vsub.s32 %v821, %v823
        %v825 = vrot.slane %v817, %v824
        %v827 = vunpack.c.l.s4 1934713408
        %v828 = vunpack.c.0.s8 %v827
        %v829 = vlaneseq
        %v830 = vshrl.u32 %v829, 7
        %v831 = vsub.s32 %v828, %v830
        %v832 = vrot.slane %v818, %v831
        %v833 = vcombine.low %v777, %v793
        %v834 = vcombine.high %v777, %v793
        %v836 = vunpack.c.l.s4 1934713408
        %v837 = vunpack.c.0.s8 %v836
        %v838 = vlaneseq
        %v839 = vshrl.u32 %v838, 7
        %v840 = vsub.s32 %v837, %v839
        %v841 = vrot.slane %v833, %v840
        %v843 = vunpack.c.l.s4 1934713408
        %v844 = vunpack.c.0.s8 %v843
        %v845 = vlaneseq
        %v846 = vshrl.u32 %v845, 7
        %v847 = vsub.s32 %v844, %v846
        %v848 = vrot.slane %v834, %v847
        %v849 = vcombine.low %v784, %v800
        %v850 = vcombine.high %v784, %v800
        %v852 = vunpack.c.l.s4 1934713408
        %v853 = vunpack.c.0.s8 %v852
        %v854 = vlaneseq
        %v855 = vshrl.u32 %v854, 7
        %v856 = vsub.s32 %v853, %v855
        %v857 = vrot.slane %v849, %v856
        %v859 = vunpack.c.l.s4 1934713408
        %v860 = vunpack.c.0.s8 %v859
        %v861 = vlaneseq
        %v862 = vshrl.u32 %v861, 7
        %v863 = vsub.s32 %v860, %v862
        %v864 = vrot.slane %v850, %v863
        %v865 = vcombine.low %v809, %v841
        %v866 = vcombine.high %v809, %v841
        %v867 = vcombine.low %v816, %v848
        %v868 = vcombine.high %v816, %v848
        %v869 = vcombine.low %v825, %v857
        %v870 = vcombine.high %v825, %v857
        %v871 = vcombine.low %v832, %v864
        %v872 = vcombine.high %v832, %v864
        %v873 = vcombine.low %v865, %v867
        %v874 = vcombine.high %v865, %v867
        %v876 = vunpack.c.l.s4 1983009808
        %v877 = vunpack.c.0.s8 %v876
        %v878 = vlaneseq
        %v879 = vshrl.u32 %v878, 7
        %v880 = vsub.s32 %v877, %v879
        %v881 = vrot.slane %v873, %v880
        %v883 = vunpack.c.l.s4 1983009808
        %v884 = vunpack.c.0.s8 %v883
        %v885 = vlaneseq
        %v886 = vshrl.u32 %v885, 7
        %v887 = vsub.s32 %v884, %v886
        %v888 = vrot.slane %v874, %v887
        %v889 = vcombine.low %v866, %v868
        %v890 = vcombine.high %v866, %v868
        %v892 = vunpack.c.l.s4 1983009808
        %v893 = vunpack.c.0.s8 %v892
        %v894 = vlaneseq
        %v895 = vshrl.u32 %v894, 7
        %v896 = vsub.s32 %v893, %v895
        %v897 = vrot.slane %v889, %v896
        %v899 = vunpack.c.l.s4 1983009808
        %v900 = vunpack.c.0.s8 %v899
        %v901 = vlaneseq
        %v902 = vshrl.u32 %v901, 7
        %v903 = vsub.s32 %v900, %v902
        %v904 = vrot.slane %v890, %v903
        %v905 = vcombine.low %v869, %v871
        %v906 = vcombine.high %v869, %v871
        %v908 = vunpack.c.l.s4 1983009808
        %v909 = vunpack.c.0.s8 %v908
        %v910 = vlaneseq
        %v911 = vshrl.u32 %v910, 7
        %v912 = vsub.s32 %v909, %v911
        %v913 = vrot.slane %v905, %v912
        %v915 = vunpack.c.l.s4 1983009808
        %v916 = vunpack.c.0.s8 %v915
        %v917 = vlaneseq
        %v918 = vshrl.u32 %v917, 7
        %v919 = vsub.s32 %v916, %v918
        %v920 = vrot.slane %v906, %v919
        %v921 = vcombine.low %v870, %v872
        %v922 = vcombine.high %v870, %v872
        %v924 = vunpack.c.l.s4 1983009808
        %v925 = vunpack.c.0.s8 %v924
        %v926 = vlaneseq
        %v927 = vshrl.u32 %v926, 7
        %v928 = vsub.s32 %v925, %v927
        %v929 = vrot.slane %v921, %v928
        %v931 = vunpack.c.l.s4 1983009808
        %v932 = vunpack.c.0.s8 %v931
        %v933 = vlaneseq
        %v934 = vshrl.u32 %v933, 7
        %v935 = vsub.s32 %v932, %v934
        %v936 = vrot.slane %v922, %v935
        %v937 = vcombine.low %v881, %v897
        %v938 = vcombine.high %v881, %v897
        %v940 = vunpack.c.l.s4 1934713408
        %v941 = vunpack.c.0.s8 %v940
        %v942 = vlaneseq
        %v943 = vshrl.u32 %v942, 7
        %v944 = vsub.s32 %v941, %v943
        %v945 = vrot.slane %v937, %v944
        %v947 = vunpack.c.l.s4 1934713408
        %v948 = vunpack.c.0.s8 %v947
        %v949 = vlaneseq
        %v950 = vshrl.u32 %v949, 7
        %v951 = vsub.s32 %v948, %v950
        %v952 = vrot.slane %v938, %v951
        %v953 = vcombine.low %v888, %v904
        %v954 = vcombine.high %v888, %v904
        %v956 = vunpack.c.l.s4 1934713408
        %v957 = vunpack.c.0.s8 %v956
        %v958 = vlaneseq
        %v959 = vshrl.u32 %v958, 7
        %v960 = vsub.s32 %v957, %v959
        %v961 = vrot.slane %v953, %v960
        %v963 = vunpack.c.l.s4 1934713408
        %v964 = vunpack.c.0.s8 %v963
        %v965 = vlaneseq
        %v966 = vshrl.u32 %v965, 7
        %v967 = vsub.s32 %v964, %v966
        %v968 = vrot.slane %v954, %v967
        %v969 = vcombine.low %v913, %v929
        %v970 = vcombine.high %v913, %v929
        %v972 = vunpack.c.l.s4 1934713408
        %v973 = vunpack.c.0.s8 %v972
        %v974 = vlaneseq
        %v975 = vshrl.u32 %v974, 7
        %v976 = vsub.s32 %v973, %v975
        %v977 = vrot.slane %v969, %v976
        %v979 = vunpack.c.l.s4 1934713408
        %v980 = vunpack.c.0.s8 %v979
        %v981 = vlaneseq
        %v982 = vshrl.u32 %v981, 7
        %v983 = vsub.s32 %v980, %v982
        %v984 = vrot.slane %v970, %v983
        %v985 = vcombine.low %v920, %v936
        %v986 = vcombine.high %v920, %v936
        %v988 = vunpack.c.l.s4 1934713408
        %v989 = vunpack.c.0.s8 %v988
        %v990 = vlaneseq
        %v991 = vshrl.u32 %v990, 7
        %v992 = vsub.s32 %v989, %v991
        %v993 = vrot.slane %v985, %v992
        %v995 = vunpack.c.l.s4 1934713408
        %v996 = vunpack.c.0.s8 %v995
        %v997 = vlaneseq
        %v998 = vshrl.u32 %v997, 7
        %v999 = vsub.s32 %v996, %v998
        %v1000 = vrot.slane %v986, %v999
        %v1001 = vcombine.low %v945, %v977
        %v1002 = vcombine.high %v945, %v977
        %v1003 = vcombine.low %v952, %v984
        %v1004 = vcombine.high %v952, %v984
        %v1005 = vcombine.low %v961, %v993
        %v1006 = vcombine.high %v961, %v993
        %v1007 = vcombine.low %v968, %v1000
        %v1008 = vcombine.high %v968, %v1000
        %vm1009 = vcmask 64512
        %v1011 = vsel %vm1009, %v711, 0
        %v1014 = vsel %vm1009, %v1001, 0
        %1016 = vmatprep.subr.mxu0 0.0
        %1017 = vmatpush1.xpose.msra.mxu0 0.0
        %1018 = vmatprep.subr.mxu0 0.0
        %1019 = vmatpush1.xpose.msra.mxu0 0.0
        %1020 = vmatprep.subr.mxu0 0.0
        %1021 = vmatpush1.xpose.msra.mxu0 0.0
        %1022 = vmatprep.subr.mxu0 0.0
        %1023 = vmatpush1.xpose.msra.mxu0 0.0
        %1024 = vmatprep.subr.mxu0 0.0
        %1025 = vmatpush1.xpose.msra.mxu0 0.0
        %1026 = vmatprep.subr.mxu0 0.0
        %1027 = vmatpush1.xpose.msra.mxu0 0.0
        %1028 = vmatprep.subr.mxu0 0.0
        %1029 = vmatpush1.xpose.msra.mxu0 0.0
        %1030 = vmatprep.subr.mxu0 0.0
        %1031 = vmatpush1.xpose.msra.mxu0 0.0
        %1032 = vmatprep.subr.mxu0 0.0
        %1033 = vmatpush1.xpose.msra.mxu0 0.0
        %1034 = vmatprep.subr.mxu0 0.0
        %1035 = vmatpush1.xpose.msra.mxu0 0.0
        %1036 = vmatprep.subr.mxu0 0.0
        %1037 = vmatpush1.xpose.msra.mxu0 0.0
        %1038 = vmatprep.subr.mxu0 0.0
        %1039 = vmatpush1.xpose.msra.mxu0 0.0
        %1040 = vmatprep.subr.mxu0 0.0
        %1041 = vmatpush1.xpose.msra.mxu0 0.0
        %1042 = vmatprep.subr.mxu0 0.0
        %1043 = vmatpush1.xpose.msra.mxu0 0.0
        %1044 = vmatprep.subr.mxu0 0.0
        %1045 = vmatpush1.xpose.msra.mxu0 0.0
        %1046 = vmatprep.subr.mxu0 0.0
        %1047 = vmatpush1.xpose.msra.mxu0 %v1014
        %1048 = vmatprep.subr.mxu0 0.0
        %1049 = vmatpush2.xpose.msra.mxu0 0.0
        %1050 = vmatprep.subr.mxu0 0.0
        %1051 = vmatpush2.xpose.msra.mxu0 0.0
        %1052 = vmatprep.subr.mxu0 0.0
        %1053 = vmatpush2.xpose.msra.mxu0 0.0
        %1054 = vmatprep.subr.mxu0 0.0
        %1055 = vmatpush2.xpose.msra.mxu0 0.0
        %1056 = vmatprep.subr.mxu0 0.0
        %1057 = vmatpush2.xpose.msra.mxu0 0.0
        %1058 = vmatprep.subr.mxu0 0.0
        %1059 = vmatpush2.xpose.msra.mxu0 0.0
        %1060 = vmatprep.subr.mxu0 0.0
        %1061 = vmatpush2.xpose.msra.mxu0 0.0
        %1062 = vmatprep.subr.mxu0 0.0
        %1063 = vmatpush2.xpose.msra.mxu0 0.0
        %1064 = vmatprep.subr.mxu0 0.0
        %1065 = vmatpush2.xpose.msra.mxu0 0.0
        %1066 = vmatprep.subr.mxu0 0.0
        %1067 = vmatpush2.xpose.msra.mxu0 0.0
        %1068 = vmatprep.subr.mxu0 0.0
        %1069 = vmatpush2.xpose.msra.mxu0 0.0
        %1070 = vmatprep.subr.mxu0 0.0
        %1071 = vmatpush2.xpose.msra.mxu0 0.0
        %1072 = vmatprep.subr.mxu0 0.0
        %1073 = vmatpush2.xpose.msra.mxu0 0.0
        %1074 = vmatprep.subr.mxu0 0.0
        %1075 = vmatpush2.xpose.msra.mxu0 0.0
        %1076 = vmatprep.subr.mxu0 0.0
        %1077 = vmatpush2.xpose.msra.mxu0 0.0
        %1078 = vmatprep.subr.mxu0 0.0
        %1079 = vmatpush2.xpose.msra.mxu0 0.0
        %1080 = vmatprep.mubr.f32.mxu0 0.0
        %1081 = vmatmul.mubr.f32.gmra.mxu0 %v1011
        %v1082 = vpop.f32.mrf.mxu0
        %v1083 = vadd.f32 0.0, %v1082
        %v1084 = vpop.f32.mrf.mxu0
        %1085 = vdwg.mxu0
        %v1087 = vsel %vm1009, %v712, 0
        %v1090 = vsel %vm1009, %v1002, 0
        %1092 = vmatprep.subr.mxu0 0.0
        %1093 = vmatpush1.xpose.msra.mxu0 0.0
        %1094 = vmatprep.subr.mxu0 0.0
        %1095 = vmatpush1.xpose.msra.mxu0 0.0
        %1096 = vmatprep.subr.mxu0 0.0
        %1097 = vmatpush1.xpose.msra.mxu0 0.0
        %1098 = vmatprep.subr.mxu0 0.0
        %1099 = vmatpush1.xpose.msra.mxu0 0.0
        %1100 = vmatprep.subr.mxu0 0.0
        %1101 = vmatpush1.xpose.msra.mxu0 0.0
        %1102 = vmatprep.subr.mxu0 0.0
        %1103 = vmatpush1.xpose.msra.mxu0 0.0
        %1104 = vmatprep.subr.mxu0 0.0
        %1105 = vmatpush1.xpose.msra.mxu0 0.0
        %1106 = vmatprep.subr.mxu0 0.0
        %1107 = vmatpush1.xpose.msra.mxu0 0.0
        %1108 = vmatprep.subr.mxu0 0.0
        %1109 = vmatpush1.xpose.msra.mxu0 0.0
        %1110 = vmatprep.subr.mxu0 0.0
        %1111 = vmatpush1.xpose.msra.mxu0 0.0
        %1112 = vmatprep.subr.mxu0 0.0
        %1113 = vmatpush1.xpose.msra.mxu0 0.0
        %1114 = vmatprep.subr.mxu0 0.0
        %1115 = vmatpush1.xpose.msra.mxu0 0.0
        %1116 = vmatprep.subr.mxu0 0.0
        %1117 = vmatpush1.xpose.msra.mxu0 0.0
        %1118 = vmatprep.subr.mxu0 0.0
        %1119 = vmatpush1.xpose.msra.mxu0 0.0
        %1120 = vmatprep.subr.mxu0 0.0
        %1121 = vmatpush1.xpose.msra.mxu0 0.0
        %1122 = vmatprep.subr.mxu0 0.0
        %1123 = vmatpush1.xpose.msra.mxu0 %v1090
        %1124 = vmatprep.subr.mxu0 0.0
        %1125 = vmatpush2.xpose.msra.mxu0 0.0
        %1126 = vmatprep.subr.mxu0 0.0
        %1127 = vmatpush2.xpose.msra.mxu0 0.0
        %1128 = vmatprep.subr.mxu0 0.0
        %1129 = vmatpush2.xpose.msra.mxu0 0.0
        %1130 = vmatprep.subr.mxu0 0.0
        %1131 = vmatpush2.xpose.msra.mxu0 0.0
        %1132 = vmatprep.subr.mxu0 0.0
        %1133 = vmatpush2.xpose.msra.mxu0 0.0
        %1134 = vmatprep.subr.mxu0 0.0
        %1135 = vmatpush2.xpose.msra.mxu0 0.0
        %1136 = vmatprep.subr.mxu0 0.0
        %1137 = vmatpush2.xpose.msra.mxu0 0.0
        %1138 = vmatprep.subr.mxu0 0.0
        %1139 = vmatpush2.xpose.msra.mxu0 0.0
        %1140 = vmatprep.subr.mxu0 0.0
        %1141 = vmatpush2.xpose.msra.mxu0 0.0
        %1142 = vmatprep.subr.mxu0 0.0
        %1143 = vmatpush2.xpose.msra.mxu0 0.0
        %1144 = vmatprep.subr.mxu0 0.0
        %1145 = vmatpush2.xpose.msra.mxu0 0.0
        %1146 = vmatprep.subr.mxu0 0.0
        %1147 = vmatpush2.xpose.msra.mxu0 0.0
        %1148 = vmatprep.subr.mxu0 0.0
        %1149 = vmatpush2.xpose.msra.mxu0 0.0
        %1150 = vmatprep.subr.mxu0 0.0
        %1151 = vmatpush2.xpose.msra.mxu0 0.0
        %1152 = vmatprep.subr.mxu0 0.0
        %1153 = vmatpush2.xpose.msra.mxu0 0.0
        %1154 = vmatprep.subr.mxu0 0.0
        %1155 = vmatpush2.xpose.msra.mxu0 0.0
        %1156 = vmatprep.mubr.f32.mxu0 0.0
        %1157 = vmatmul.mubr.f32.gmra.mxu0 %v1087
        %v1158 = vpop.f32.mrf.mxu0
        %v1159 = vadd.f32 0.0, %v1158
        %v1160 = vpop.f32.mrf.mxu0
        %1161 = vdwg.mxu0
        %v1163 = vsel %vm1009, %v713, 0
        %v1166 = vsel %vm1009, %v1003, 0
        %1168 = vmatprep.subr.mxu0 0.0
        %1169 = vmatpush1.xpose.msra.mxu0 0.0
        %1170 = vmatprep.subr.mxu0 0.0
        %1171 = vmatpush1.xpose.msra.mxu0 0.0
        %1172 = vmatprep.subr.mxu0 0.0
        %1173 = vmatpush1.xpose.msra.mxu0 0.0
        %1174 = vmatprep.subr.mxu0 0.0
        %1175 = vmatpush1.xpose.msra.mxu0 0.0
        %1176 = vmatprep.subr.mxu0 0.0
        %1177 = vmatpush1.xpose.msra.mxu0 0.0
        %1178 = vmatprep.subr.mxu0 0.0
        %1179 = vmatpush1.xpose.msra.mxu0 0.0
        %1180 = vmatprep.subr.mxu0 0.0
        %1181 = vmatpush1.xpose.msra.mxu0 0.0
        %1182 = vmatprep.subr.mxu0 0.0
        %1183 = vmatpush1.xpose.msra.mxu0 0.0
        %1184 = vmatprep.subr.mxu0 0.0
        %1185 = vmatpush1.xpose.msra.mxu0 0.0
        %1186 = vmatprep.subr.mxu0 0.0
        %1187 = vmatpush1.xpose.msra.mxu0 0.0
        %1188 = vmatprep.subr.mxu0 0.0
        %1189 = vmatpush1.xpose.msra.mxu0 0.0
        %1190 = vmatprep.subr.mxu0 0.0
        %1191 = vmatpush1.xpose.msra.mxu0 0.0
        %1192 = vmatprep.subr.mxu0 0.0
        %1193 = vmatpush1.xpose.msra.mxu0 0.0
        %1194 = vmatprep.subr.mxu0 0.0
        %1195 = vmatpush1.xpose.msra.mxu0 0.0
        %1196 = vmatprep.subr.mxu0 0.0
        %1197 = vmatpush1.xpose.msra.mxu0 0.0
        %1198 = vmatprep.subr.mxu0 0.0
        %1199 = vmatpush1.xpose.msra.mxu0 %v1166
        %1200 = vmatprep.subr.mxu0 0.0
        %1201 = vmatpush2.xpose.msra.mxu0 0.0
        %1202 = vmatprep.subr.mxu0 0.0
        %1203 = vmatpush2.xpose.msra.mxu0 0.0
        %1204 = vmatprep.subr.mxu0 0.0
        %1205 = vmatpush2.xpose.msra.mxu0 0.0
        %1206 = vmatprep.subr.mxu0 0.0
        %1207 = vmatpush2.xpose.msra.mxu0 0.0
        %1208 = vmatprep.subr.mxu0 0.0
        %1209 = vmatpush2.xpose.msra.mxu0 0.0
        %1210 = vmatprep.subr.mxu0 0.0
        %1211 = vmatpush2.xpose.msra.mxu0 0.0
        %1212 = vmatprep.subr.mxu0 0.0
        %1213 = vmatpush2.xpose.msra.mxu0 0.0
        %1214 = vmatprep.subr.mxu0 0.0
        %1215 = vmatpush2.xpose.msra.mxu0 0.0
        %1216 = vmatprep.subr.mxu0 0.0
        %1217 = vmatpush2.xpose.msra.mxu0 0.0
        %1218 = vmatprep.subr.mxu0 0.0
        %1219 = vmatpush2.xpose.msra.mxu0 0.0
        %1220 = vmatprep.subr.mxu0 0.0
        %1221 = vmatpush2.xpose.msra.mxu0 0.0
        %1222 = vmatprep.subr.mxu0 0.0
        %1223 = vmatpush2.xpose.msra.mxu0 0.0
        %1224 = vmatprep.subr.mxu0 0.0
        %1225 = vmatpush2.xpose.msra.mxu0 0.0
        %1226 = vmatprep.subr.mxu0 0.0
        %1227 = vmatpush2.xpose.msra.mxu0 0.0
        %1228 = vmatprep.subr.mxu0 0.0
        %1229 = vmatpush2.xpose.msra.mxu0 0.0
        %1230 = vmatprep.subr.mxu0 0.0
        %1231 = vmatpush2.xpose.msra.mxu0 0.0
        %1232 = vmatprep.mubr.f32.mxu0 0.0
        %1233 = vmatmul.mubr.f32.gmra.mxu0 %v1163
        %v1234 = vpop.f32.mrf.mxu0
        %v1235 = vadd.f32 0.0, %v1234
        %v1236 = vpop.f32.mrf.mxu0
        %1237 = vdwg.mxu0
        %v1239 = vsel %vm1009, %v714, 0
        %v1242 = vsel %vm1009, %v1004, 0
        %1244 = vmatprep.subr.mxu0 0.0
        %1245 = vmatpush1.xpose.msra.mxu0 0.0
        %1246 = vmatprep.subr.mxu0 0.0
        %1247 = vmatpush1.xpose.msra.mxu0 0.0
        %1248 = vmatprep.subr.mxu0 0.0
        %1249 = vmatpush1.xpose.msra.mxu0 0.0
        %1250 = vmatprep.subr.mxu0 0.0
        %1251 = vmatpush1.xpose.msra.mxu0 0.0
        %1252 = vmatprep.subr.mxu0 0.0
        %1253 = vmatpush1.xpose.msra.mxu0 0.0
        %1254 = vmatprep.subr.mxu0 0.0
        %1255 = vmatpush1.xpose.msra.mxu0 0.0
        %1256 = vmatprep.subr.mxu0 0.0
        %1257 = vmatpush1.xpose.msra.mxu0 0.0
        %1258 = vmatprep.subr.mxu0 0.0
        %1259 = vmatpush1.xpose.msra.mxu0 0.0
        %1260 = vmatprep.subr.mxu0 0.0
        %1261 = vmatpush1.xpose.msra.mxu0 0.0
        %1262 = vmatprep.subr.mxu0 0.0
        %1263 = vmatpush1.xpose.msra.mxu0 0.0
        %1264 = vmatprep.subr.mxu0 0.0
        %1265 = vmatpush1.xpose.msra.mxu0 0.0
        %1266 = vmatprep.subr.mxu0 0.0
        %1267 = vmatpush1.xpose.msra.mxu0 0.0
        %1268 = vmatprep.subr.mxu0 0.0
        %1269 = vmatpush1.xpose.msra.mxu0 0.0
        %1270 = vmatprep.subr.mxu0 0.0
        %1271 = vmatpush1.xpose.msra.mxu0 0.0
        %1272 = vmatprep.subr.mxu0 0.0
        %1273 = vmatpush1.xpose.msra.mxu0 0.0
        %1274 = vmatprep.subr.mxu0 0.0
        %1275 = vmatpush1.xpose.msra.mxu0 %v1242
        %1276 = vmatprep.subr.mxu0 0.0
        %1277 = vmatpush2.xpose.msra.mxu0 0.0
        %1278 = vmatprep.subr.mxu0 0.0
        %1279 = vmatpush2.xpose.msra.mxu0 0.0
        %1280 = vmatprep.subr.mxu0 0.0
        %1281 = vmatpush2.xpose.msra.mxu0 0.0
        %1282 = vmatprep.subr.mxu0 0.0
        %1283 = vmatpush2.xpose.msra.mxu0 0.0
        %1284 = vmatprep.subr.mxu0 0.0
        %1285 = vmatpush2.xpose.msra.mxu0 0.0
        %1286 = vmatprep.subr.mxu0 0.0
        %1287 = vmatpush2.xpose.msra.mxu0 0.0
        %1288 = vmatprep.subr.mxu0 0.0
        %1289 = vmatpush2.xpose.msra.mxu0 0.0
        %1290 = vmatprep.subr.mxu0 0.0
        %1291 = vmatpush2.xpose.msra.mxu0 0.0
        %1292 = vmatprep.subr.mxu0 0.0
        %1293 = vmatpush2.xpose.msra.mxu0 0.0
        %1294 = vmatprep.subr.mxu0 0.0
        %1295 = vmatpush2.xpose.msra.mxu0 0.0
        %1296 = vmatprep.subr.mxu0 0.0
        %1297 = vmatpush2.xpose.msra.mxu0 0.0
        %1298 = vmatprep.subr.mxu0 0.0
        %1299 = vmatpush2.xpose.msra.mxu0 0.0
        %1300 = vmatprep.subr.mxu0 0.0
        %1301 = vmatpush2.xpose.msra.mxu0 0.0
        %1302 = vmatprep.subr.mxu0 0.0
        %1303 = vmatpush2.xpose.msra.mxu0 0.0
        %1304 = vmatprep.subr.mxu0 0.0
        %1305 = vmatpush2.xpose.msra.mxu0 0.0
        %1306 = vmatprep.subr.mxu0 0.0
        %1307 = vmatpush2.xpose.msra.mxu0 0.0
        %1308 = vmatprep.mubr.f32.mxu0 0.0
        %1309 = vmatmul.mubr.f32.gmra.mxu0 %v1239
        %v1310 = vpop.f32.mrf.mxu0
        %v1311 = vadd.f32 0.0, %v1310
        %v1312 = vpop.f32.mrf.mxu0
        %1313 = vdwg.mxu0
        %v1314 = vsel %vm1009, %v1083, -inf
        %1315 = vmax.xlane.f32.xlu0 %v1314
        %v1316 = vpop.xlane.xlu0 %1315
        %v1317 = vsel %vm1009, %v1159, -inf
        %1318 = vmax.xlane.f32.xlu0 %v1317
        %v1319 = vpop.xlane.xlu0 %1318
        %v1320 = vsel %vm1009, %v1235, -inf
        %1321 = vmax.xlane.f32.xlu0 %v1320
        %v1322 = vpop.xlane.xlu0 %1321
        %v1323 = vsel %vm1009, %v1311, -inf
        %1324 = vmax.xlane.f32.xlu0 %v1323
        %v1325 = vpop.xlane.xlu0 %1324
        %v1326 = vsub.f32 %v1083, %v1316
        %v1327 = vsub.f32 %v1159, %v1319
        %v1328 = vsub.f32 %v1235, %v1322
        %v1329 = vsub.f32 %v1311, %v1325
        %v1330 = vmul.f32 %v1326, 1.442695
        %v1331 = vpow.pop %v1330
        %v1332 = vmul.f32 %v1327, 1.442695
        %v1333 = vpow.pop %v1332
        %v1334 = vmul.f32 %v1328, 1.442695
        %v1335 = vpow.pop %v1334
        %v1336 = vmul.f32 %v1329, 1.442695
        %v1337 = vpow.pop %v1336
        %v1338 = vsel %vm1009, %v1331, 0.0
        %1339 = vadd.xlane.f32.xlu0 %v1338
        %v1340 = vpop.xlane.xlu0 %1339
        %v1341 = vsel %vm1009, %v1333, 0.0
        %1342 = vadd.xlane.f32.xlu0 %v1341
        %v1343 = vpop.xlane.xlu0 %1342
        %v1344 = vsel %vm1009, %v1335, 0.0
        %1345 = vadd.xlane.f32.xlu0 %v1344
        %v1346 = vpop.xlane.xlu0 %1345
        %v1347 = vsel %vm1009, %v1337, 0.0
        %1348 = vadd.xlane.f32.xlu0 %v1347
        %v1349 = vpop.xlane.xlu0 %1348
        %v1351 = vsel %vm1009, %v1331, 0
        %1353 = vmatprep.subr.mxu0 0.0
        %1354 = vmatpush1.msra.mxu0 0.0
        %1355 = vmatprep.subr.mxu0 0.0
        %1356 = vmatpush1.msra.mxu0 0.0
        %1357 = vmatprep.subr.mxu0 0.0
        %1358 = vmatpush1.msra.mxu0 0.0
        %1359 = vmatprep.subr.mxu0 0.0
        %1360 = vmatpush1.msra.mxu0 0.0
        %1361 = vmatprep.subr.mxu0 0.0
        %1362 = vmatpush1.msra.mxu0 0.0
        %1363 = vmatprep.subr.mxu0 0.0
        %1364 = vmatpush1.msra.mxu0 0.0
        %1365 = vmatprep.subr.mxu0 0.0
        %1366 = vmatpush1.msra.mxu0 0.0
        %1367 = vmatprep.subr.mxu0 0.0
        %1368 = vmatpush1.msra.mxu0 0.0
        %1369 = vmatprep.subr.mxu0 0.0
        %1370 = vmatpush1.msra.mxu0 0.0
        %1371 = vmatprep.subr.mxu0 0.0
        %1372 = vmatpush1.msra.mxu0 0.0
        %1373 = vmatprep.subr.mxu0 0.0
        %1374 = vmatpush1.msra.mxu0 0.0
        %1375 = vmatprep.subr.mxu0 0.0
        %1376 = vmatpush1.msra.mxu0 0.0
        %1377 = vmatprep.subr.mxu0 0.0
        %1378 = vmatpush1.msra.mxu0 0.0
        %1379 = vmatprep.subr.mxu0 0.0
        %1380 = vmatpush1.msra.mxu0 0.0
        %1381 = vmatprep.subr.mxu0 0.0
        %1382 = vmatpush1.msra.mxu0 0.0
        %1383 = vmatprep.subr.mxu0 0.0
        %1384 = vmatpush1.msra.mxu0 %v1005
        %1385 = vmatprep.subr.mxu0 0.0
        %1386 = vmatpush2.msra.mxu0 0.0
        %1387 = vmatprep.subr.mxu0 0.0
        %1388 = vmatpush2.msra.mxu0 0.0
        %1389 = vmatprep.subr.mxu0 0.0
        %1390 = vmatpush2.msra.mxu0 0.0
        %1391 = vmatprep.subr.mxu0 0.0
        %1392 = vmatpush2.msra.mxu0 0.0
        %1393 = vmatprep.subr.mxu0 0.0
        %1394 = vmatpush2.msra.mxu0 0.0
        %1395 = vmatprep.subr.mxu0 0.0
        %1396 = vmatpush2.msra.mxu0 0.0
        %1397 = vmatprep.subr.mxu0 0.0
        %1398 = vmatpush2.msra.mxu0 0.0
        %1399 = vmatprep.subr.mxu0 0.0
        %1400 = vmatpush2.msra.mxu0 0.0
        %1401 = vmatprep.subr.mxu0 0.0
        %1402 = vmatpush2.msra.mxu0 0.0
        %1403 = vmatprep.subr.mxu0 0.0
        %1404 = vmatpush2.msra.mxu0 0.0
        %1405 = vmatprep.subr.mxu0 0.0
        %1406 = vmatpush2.msra.mxu0 0.0
        %1407 = vmatprep.subr.mxu0 0.0
        %1408 = vmatpush2.msra.mxu0 0.0
        %1409 = vmatprep.subr.mxu0 0.0
        %1410 = vmatpush2.msra.mxu0 0.0
        %1411 = vmatprep.subr.mxu0 0.0
        %1412 = vmatpush2.msra.mxu0 0.0
        %1413 = vmatprep.subr.mxu0 0.0
        %1414 = vmatpush2.msra.mxu0 0.0
        %1415 = vmatprep.subr.mxu0 0.0
        %1416 = vmatpush2.msra.mxu0 0.0
        %1417 = vmatprep.mubr.f32.mxu0 0.0
        %1418 = vmatmul.mubr.f32.gmra.mxu0 %v1351
        %v1419 = vpop.f32.mrf.mxu0
        %v1420 = vadd.f32 0.0, %v1419
        %v1421 = vpop.f32.mrf.mxu0
        %1422 = vdwg.mxu0
        %v1424 = vsel %vm1009, %v1333, 0
        %1426 = vmatprep.subr.mxu0 0.0
        %1427 = vmatpush1.msra.mxu0 0.0
        %1428 = vmatprep.subr.mxu0 0.0
        %1429 = vmatpush1.msra.mxu0 0.0
        %1430 = vmatprep.subr.mxu0 0.0
        %1431 = vmatpush1.msra.mxu0 0.0
        %1432 = vmatprep.subr.mxu0 0.0
        %1433 = vmatpush1.msra.mxu0 0.0
        %1434 = vmatprep.subr.mxu0 0.0
        %1435 = vmatpush1.msra.mxu0 0.0
        %1436 = vmatprep.subr.mxu0 0.0
        %1437 = vmatpush1.msra.mxu0 0.0
        %1438 = vmatprep.subr.mxu0 0.0
        %1439 = vmatpush1.msra.mxu0 0.0
        %1440 = vmatprep.subr.mxu0 0.0
        %1441 = vmatpush1.msra.mxu0 0.0
        %1442 = vmatprep.subr.mxu0 0.0
        %1443 = vmatpush1.msra.mxu0 0.0
        %1444 = vmatprep.subr.mxu0 0.0
        %1445 = vmatpush1.msra.mxu0 0.0
        %1446 = vmatprep.subr.mxu0 0.0
        %1447 = vmatpush1.msra.mxu0 0.0
        %1448 = vmatprep.subr.mxu0 0.0
        %1449 = vmatpush1.msra.mxu0 0.0
        %1450 = vmatprep.subr.mxu0 0.0
        %1451 = vmatpush1.msra.mxu0 0.0
        %1452 = vmatprep.subr.mxu0 0.0
        %1453 = vmatpush1.msra.mxu0 0.0
        %1454 = vmatprep.subr.mxu0 0.0
        %1455 = vmatpush1.msra.mxu0 0.0
        %1456 = vmatprep.subr.mxu0 0.0
        %1457 = vmatpush1.msra.mxu0 %v1006
        %1458 = vmatprep.subr.mxu0 0.0
        %1459 = vmatpush2.msra.mxu0 0.0
        %1460 = vmatprep.subr.mxu0 0.0
        %1461 = vmatpush2.msra.mxu0 0.0
        %1462 = vmatprep.subr.mxu0 0.0
        %1463 = vmatpush2.msra.mxu0 0.0
        %1464 = vmatprep.subr.mxu0 0.0
        %1465 = vmatpush2.msra.mxu0 0.0
        %1466 = vmatprep.subr.mxu0 0.0
        %1467 = vmatpush2.msra.mxu0 0.0
        %1468 = vmatprep.subr.mxu0 0.0
        %1469 = vmatpush2.msra.mxu0 0.0
        %1470 = vmatprep.subr.mxu0 0.0
        %1471 = vmatpush2.msra.mxu0 0.0
        %1472 = vmatprep.subr.mxu0 0.0
        %1473 = vmatpush2.msra.mxu0 0.0
        %1474 = vmatprep.subr.mxu0 0.0
        %1475 = vmatpush2.msra.mxu0 0.0
        %1476 = vmatprep.subr.mxu0 0.0
        %1477 = vmatpush2.msra.mxu0 0.0
        %1478 = vmatprep.subr.mxu0 0.0
        %1479 = vmatpush2.msra.mxu0 0.0
        %1480 = vmatprep.subr.mxu0 0.0
        %1481 = vmatpush2.msra.mxu0 0.0
        %1482 = vmatprep.subr.mxu0 0.0
        %1483 = vmatpush2.msra.mxu0 0.0
        %1484 = vmatprep.subr.mxu0 0.0
        %1485 = vmatpush2.msra.mxu0 0.0
        %1486 = vmatprep.subr.mxu0 0.0
        %1487 = vmatpush2.msra.mxu0 0.0
        %1488 = vmatprep.subr.mxu0 0.0
        %1489 = vmatpush2.msra.mxu0 0.0
        %1490 = vmatprep.mubr.f32.mxu0 0.0
        %1491 = vmatmul.mubr.f32.gmra.mxu0 %v1424
        %v1492 = vpop.f32.mrf.mxu0
        %v1493 = vadd.f32 0.0, %v1492
        %v1494 = vpop.f32.mrf.mxu0
        %1495 = vdwg.mxu0
        %v1497 = vsel %vm1009, %v1335, 0
        %1499 = vmatprep.subr.mxu0 0.0
        %1500 = vmatpush1.msra.mxu0 0.0
        %1501 = vmatprep.subr.mxu0 0.0
        %1502 = vmatpush1.msra.mxu0 0.0
        %1503 = vmatprep.subr.mxu0 0.0
        %1504 = vmatpush1.msra.mxu0 0.0
        %1505 = vmatprep.subr.mxu0 0.0
        %1506 = vmatpush1.msra.mxu0 0.0
        %1507 = vmatprep.subr.mxu0 0.0
        %1508 = vmatpush1.msra.mxu0 0.0
        %1509 = vmatprep.subr.mxu0 0.0
        %1510 = vmatpush1.msra.mxu0 0.0
        %1511 = vmatprep.subr.mxu0 0.0
        %1512 = vmatpush1.msra.mxu0 0.0
        %1513 = vmatprep.subr.mxu0 0.0
        %1514 = vmatpush1.msra.mxu0 0.0
        %1515 = vmatprep.subr.mxu0 0.0
        %1516 = vmatpush1.msra.mxu0 0.0
        %1517 = vmatprep.subr.mxu0 0.0
        %1518 = vmatpush1.msra.mxu0 0.0
        %1519 = vmatprep.subr.mxu0 0.0
        %1520 = vmatpush1.msra.mxu0 0.0
        %1521 = vmatprep.subr.mxu0 0.0
        %1522 = vmatpush1.msra.mxu0 0.0
        %1523 = vmatprep.subr.mxu0 0.0
        %1524 = vmatpush1.msra.mxu0 0.0
        %1525 = vmatprep.subr.mxu0 0.0
        %1526 = vmatpush1.msra.mxu0 0.0
        %1527 = vmatprep.subr.mxu0 0.0
        %1528 = vmatpush1.msra.mxu0 0.0
        %1529 = vmatprep.subr.mxu0 0.0
        %1530 = vmatpush1.msra.mxu0 %v1007
        %1531 = vmatprep.subr.mxu0 0.0
        %1532 = vmatpush2.msra.mxu0 0.0
        %1533 = vmatprep.subr.mxu0 0.0
        %1534 = vmatpush2.msra.mxu0 0.0
        %1535 = vmatprep.subr.mxu0 0.0
        %1536 = vmatpush2.msra.mxu0 0.0
        %1537 = vmatprep.subr.mxu0 0.0
        %1538 = vmatpush2.msra.mxu0 0.0
        %1539 = vmatprep.subr.mxu0 0.0
        %1540 = vmatpush2.msra.mxu0 0.0
        %1541 = vmatprep.subr.mxu0 0.0
        %1542 = vmatpush2.msra.mxu0 0.0
        %1543 = vmatprep.subr.mxu0 0.0
        %1544 = vmatpush2.msra.mxu0 0.0
        %1545 = vmatprep.subr.mxu0 0.0
        %1546 = vmatpush2.msra.mxu0 0.0
        %1547 = vmatprep.subr.mxu0 0.0
        %1548 = vmatpush2.msra.mxu0 0.0
        %1549 = vmatprep.subr.mxu0 0.0
        %1550 = vmatpush2.msra.mxu0 0.0
        %1551 = vmatprep.subr.mxu0 0.0
        %1552 = vmatpush2.msra.mxu0 0.0
        %1553 = vmatprep.subr.mxu0 0.0
        %1554 = vmatpush2.msra.mxu0 0.0
        %1555 = vmatprep.subr.mxu0 0.0
        %1556 = vmatpush2.msra.mxu0 0.0
        %1557 = vmatprep.subr.mxu0 0.0
        %1558 = vmatpush2.msra.mxu0 0.0
        %1559 = vmatprep.subr.mxu0 0.0
        %1560 = vmatpush2.msra.mxu0 0.0
        %1561 = vmatprep.subr.mxu0 0.0
        %1562 = vmatpush2.msra.mxu0 0.0
        %1563 = vmatprep.mubr.f32.mxu0 0.0
        %1564 = vmatmul.mubr.f32.gmra.mxu0 %v1497
        %v1565 = vpop.f32.mrf.mxu0
        %v1566 = vadd.f32 0.0, %v1565
        %v1567 = vpop.f32.mrf.mxu0
        %1568 = vdwg.mxu0
        %v1570 = vsel %vm1009, %v1337, 0
        %1572 = vmatprep.subr.mxu0 0.0
        %1573 = vmatpush1.msra.mxu0 0.0
        %1574 = vmatprep.subr.mxu0 0.0
        %1575 = vmatpush1.msra.mxu0 0.0
        %1576 = vmatprep.subr.mxu0 0.0
        %1577 = vmatpush1.msra.mxu0 0.0
        %1578 = vmatprep.subr.mxu0 0.0
        %1579 = vmatpush1.msra.mxu0 0.0
        %1580 = vmatprep.subr.mxu0 0.0
        %1581 = vmatpush1.msra.mxu0 0.0
        %1582 = vmatprep.subr.mxu0 0.0
        %1583 = vmatpush1.msra.mxu0 0.0
        %1584 = vmatprep.subr.mxu0 0.0
        %1585 = vmatpush1.msra.mxu0 0.0
        %1586 = vmatprep.subr.mxu0 0.0
        %1587 = vmatpush1.msra.mxu0 0.0
        %1588 = vmatprep.subr.mxu0 0.0
        %1589 = vmatpush1.msra.mxu0 0.0
        %1590 = vmatprep.subr.mxu0 0.0
        %1591 = vmatpush1.msra.mxu0 0.0
        %1592 = vmatprep.subr.mxu0 0.0
        %1593 = vmatpush1.msra.mxu0 0.0
        %1594 = vmatprep.subr.mxu0 0.0
        %1595 = vmatpush1.msra.mxu0 0.0
        %1596 = vmatprep.subr.mxu0 0.0
        %1597 = vmatpush1.msra.mxu0 0.0
        %1598 = vmatprep.subr.mxu0 0.0
        %1599 = vmatpush1.msra.mxu0 0.0
        %1600 = vmatprep.subr.mxu0 0.0
        %1601 = vmatpush1.msra.mxu0 0.0
        %1602 = vmatprep.subr.mxu0 0.0
        %1603 = vmatpush1.msra.mxu0 %v1008
        %1604 = vmatprep.subr.mxu0 0.0
        %1605 = vmatpush2.msra.mxu0 0.0
        %1606 = vmatprep.subr.mxu0 0.0
        %1607 = vmatpush2.msra.mxu0 0.0
        %1608 = vmatprep.subr.mxu0 0.0
        %1609 = vmatpush2.msra.mxu0 0.0
        %1610 = vmatprep.subr.mxu0 0.0
        %1611 = vmatpush2.msra.mxu0 0.0
        %1612 = vmatprep.subr.mxu0 0.0
        %1613 = vmatpush2.msra.mxu0 0.0
        %1614 = vmatprep.subr.mxu0 0.0
        %1615 = vmatpush2.msra.mxu0 0.0
        %1616 = vmatprep.subr.mxu0 0.0
        %1617 = vmatpush2.msra.mxu0 0.0
        %1618 = vmatprep.subr.mxu0 0.0
        %1619 = vmatpush2.msra.mxu0 0.0
        %1620 = vmatprep.subr.mxu0 0.0
        %1621 = vmatpush2.msra.mxu0 0.0
        %1622 = vmatprep.subr.mxu0 0.0
        %1623 = vmatpush2.msra.mxu0 0.0
        %1624 = vmatprep.subr.mxu0 0.0
        %1625 = vmatpush2.msra.mxu0 0.0
        %1626 = vmatprep.subr.mxu0 0.0
        %1627 = vmatpush2.msra.mxu0 0.0
        %1628 = vmatprep.subr.mxu0 0.0
        %1629 = vmatpush2.msra.mxu0 0.0
        %1630 = vmatprep.subr.mxu0 0.0
        %1631 = vmatpush2.msra.mxu0 0.0
        %1632 = vmatprep.subr.mxu0 0.0
        %1633 = vmatpush2.msra.mxu0 0.0
        %1634 = vmatprep.subr.mxu0 0.0
        %1635 = vmatpush2.msra.mxu0 0.0
        %1636 = vmatprep.mubr.f32.mxu0 0.0
        %1637 = vmatmul.mubr.f32.gmra.mxu0 %v1570
        %v1638 = vpop.f32.mrf.mxu0
        %v1639 = vadd.f32 0.0, %v1638
        %v1640 = vpop.f32.mrf.mxu0
        %1641 = vdwg.mxu0
        %v1642 = vrcp.pop %v1340
        %v1643 = vrcp.pop %v1343
        %v1644 = vrcp.pop %v1346
        %v1645 = vrcp.pop %v1349
        %v1646 = vmul.f32 %v1420, %v1642
        %v1647 = vmul.f32 %v1493, %v1643
        %v1648 = vmul.f32 %v1566, %v1644
        %v1649 = vmul.f32 %v1639, %v1645
        %v1650 = vcombine.low %v1646, %v1648
        %v1651 = vcombine.high %v1646, %v1648
        %v1653 = vunpack.c.l.s4 1983009808
        %v1654 = vunpack.c.0.s8 %v1653
        %v1655 = vlaneseq
        %v1656 = vshrl.u32 %v1655, 7
        %v1657 = vsub.s32 %v1654, %v1656
        %v1658 = vrot.slane %v1650, %v1657
        %v1660 = vunpack.c.l.s4 1983009808
        %v1661 = vunpack.c.0.s8 %v1660
        %v1662 = vlaneseq
        %v1663 = vshrl.u32 %v1662, 7
        %v1664 = vsub.s32 %v1661, %v1663
        %v1665 = vrot.slane %v1651, %v1664
        %v1666 = vcombine.low %v1647, %v1649
        %v1667 = vcombine.high %v1647, %v1649
        %v1669 = vunpack.c.l.s4 1983009808
        %v1670 = vunpack.c.0.s8 %v1669
        %v1671 = vlaneseq
        %v1672 = vshrl.u32 %v1671, 7
        %v1673 = vsub.s32 %v1670, %v1672
        %v1674 = vrot.slane %v1666, %v1673
        %v1676 = vunpack.c.l.s4 1983009808
        %v1677 = vunpack.c.0.s8 %v1676
        %v1678 = vlaneseq
        %v1679 = vshrl.u32 %v1678, 7
        %v1680 = vsub.s32 %v1677, %v1679
        %v1681 = vrot.slane %v1667, %v1680
        %v1682 = vcombine.low %v1658, %v1674
        %v1683 = vcombine.high %v1658, %v1674
        %v1685 = vunpack.c.l.s4 1934713408
        %v1686 = vunpack.c.0.s8 %v1685
        %v1687 = vlaneseq
        %v1688 = vshrl.u32 %v1687, 7
        %v1689 = vsub.s32 %v1686, %v1688
        %v1690 = vrot.slane %v1682, %v1689
        %v1692 = vunpack.c.l.s4 1934713408
        %v1693 = vunpack.c.0.s8 %v1692
        %v1694 = vlaneseq
        %v1695 = vshrl.u32 %v1694, 7
        %v1696 = vsub.s32 %v1693, %v1695
        %v1697 = vrot.slane %v1683, %v1696
        %v1698 = vcombine.low %v1665, %v1681
        %v1699 = vcombine.high %v1665, %v1681
        %v1701 = vunpack.c.l.s4 1934713408
        %v1702 = vunpack.c.0.s8 %v1701
        %v1703 = vlaneseq
        %v1704 = vshrl.u32 %v1703, 7
        %v1705 = vsub.s32 %v1702, %v1704
        %v1706 = vrot.slane %v1698, %v1705
        %v1708 = vunpack.c.l.s4 1934713408
        %v1709 = vunpack.c.0.s8 %v1708
        %v1710 = vlaneseq
        %v1711 = vshrl.u32 %v1710, 7
        %v1712 = vsub.s32 %v1709, %v1711
        %v1713 = vrot.slane %v1699, %v1712
        %v1714 = vcombine.high %v1690, 0.0
        %v1715 = vcombine.high %v1697, 0.0
        %v1716 = vcombine.high %v1706, 0.0
        %v1717 = vcombine.high %v1713, 0.0
        %v1718 = vcombine.low %v1690, %v1697
        %v1720 = vunpack.c.l.s4 1983009808
        %v1721 = vunpack.c.0.s8 %v1720
        %v1722 = vlaneseq
        %v1723 = vshrl.u32 %v1722, 7
        %v1724 = vsub.s32 %v1721, %v1723
        %v1725 = vrot.slane %v1718, %v1724
        %v1726 = vcombine.low %v1714, %v1715
        %v1728 = vunpack.c.l.s4 1983009808
        %v1729 = vunpack.c.0.s8 %v1728
        %v1730 = vlaneseq
        %v1731 = vshrl.u32 %v1730, 7
        %v1732 = vsub.s32 %v1729, %v1731
        %v1733 = vrot.slane %v1726, %v1732
        %v1734 = vcombine.low %v1706, %v1713
        %v1736 = vunpack.c.l.s4 1983009808
        %v1737 = vunpack.c.0.s8 %v1736
        %v1738 = vlaneseq
        %v1739 = vshrl.u32 %v1738, 7
        %v1740 = vsub.s32 %v1737, %v1739
        %v1741 = vrot.slane %v1734, %v1740
        %v1742 = vcombine.low %v1716, %v1717
        %v1744 = vunpack.c.l.s4 1983009808
        %v1745 = vunpack.c.0.s8 %v1744
        %v1746 = vlaneseq
        %v1747 = vshrl.u32 %v1746, 7
        %v1748 = vsub.s32 %v1745, %v1747
        %v1749 = vrot.slane %v1742, %v1748
        %v1750 = vcombine.low %v1725, %v1733
        %v1751 = vcombine.high %v1725, %v1733
        %v1753 = vunpack.c.l.s4 1934713408
        %v1754 = vunpack.c.0.s8 %v1753
        %v1755 = vlaneseq
        %v1756 = vshrl.u32 %v1755, 7
        %v1757 = vsub.s32 %v1754, %v1756
        %v1758 = vrot.slane %v1750, %v1757
        %v1760 = vunpack.c.l.s4 1934713408
        %v1761 = vunpack.c.0.s8 %v1760
        %v1762 = vlaneseq
        %v1763 = vshrl.u32 %v1762, 7
        %v1764 = vsub.s32 %v1761, %v1763
        %v1765 = vrot.slane %v1751, %v1764
        %v1766 = vcombine.low %v1741, %v1749
        %v1767 = vcombine.high %v1741, %v1749
        %v1769 = vunpack.c.l.s4 1934713408
        %v1770 = vunpack.c.0.s8 %v1769
        %v1771 = vlaneseq
        %v1772 = vshrl.u32 %v1771, 7
        %v1773 = vsub.s32 %v1770, %v1772
        %v1774 = vrot.slane %v1766, %v1773
        %v1776 = vunpack.c.l.s4 1934713408
        %v1777 = vunpack.c.0.s8 %v1776
        %v1778 = vlaneseq
        %v1779 = vshrl.u32 %v1778, 7
        %v1780 = vsub.s32 %v1777, %v1779
        %v1781 = vrot.slane %v1767, %v1780
        %v1782 = vcombine.low %v1758, %v1774
        %v1783 = vcombine.high %v1758, %v1774
        %v1784 = vcombine.low %v1765, %v1781
        %v1785 = vcombine.high %v1765, %v1781
        %1787 = vrot.lane.b32.xlu0 %v1783, 8
        %v1788 = vpop.permute.xlu0 %1787
        %1791 = vrot.lane.b32.xlu0 %v1784, 16
        %v1792 = vpop.permute.xlu0 %1791
        %1795 = vrot.lane.b32.xlu0 %v1785, 24
        %v1796 = vpop.permute.xlu0 %1795
        %v1798 = vsel %vm1009, %v1782, %v1788
        %v1799 = vsel %vm412, %v1798, %v1792
        %vm1800 = vcmask 195584
        %v1801 = vsel %vm1800, %v1799, %v1796
        %v1802 = vld [vmem:[#allocation10] sm:$0xff]
        %v1803 = vld [vmem:[#allocation10 + $0x8] sm:$0xff]
        %v1804 = vld [vmem:[#allocation10 + $0x10] sm:$0xff]
        %v1805 = vld [vmem:[#allocation10 + $0x18] sm:$0xff]
        %v1806 = vld [vmem:[%s7] sm:$0x1]
        %v1808 = vlaneseq
        %v1809 = vshrl.u32 %v1808, 7
        %v1810 = vsub.s32 0, %v1809
        %v1811 = vrot.slane %v1806, %v1810
        %vm1813 = vcmask 261120
        %v1815 = vsel %vm1813, %v1801, 0
        %1817 = vmatprep.subr.mxu0 0.0
        %1818 = vmatpush1.msra.mxu0 0.0
        %1819 = vmatprep.subr.mxu0 0.0
        %1820 = vmatpush1.msra.mxu0 0.0
        %1821 = vmatprep.subr.mxu0 0.0
        %1822 = vmatpush1.msra.mxu0 0.0
        %1823 = vmatprep.subr.mxu0 0.0
        %1824 = vmatpush1.msra.mxu0 0.0
        %1825 = vmatprep.subr.mxu0 0.0
        %1826 = vmatpush1.msra.mxu0 0.0
        %1827 = vmatprep.subr.mxu0 0.0
        %1828 = vmatpush1.msra.mxu0 0.0
        %1829 = vmatprep.subr.mxu0 0.0
        %1830 = vmatpush1.msra.mxu0 0.0
        %1831 = vmatprep.subr.mxu0 0.0
        %1832 = vmatpush1.msra.mxu0 0.0
        %1833 = vmatprep.subr.mxu0 0.0
        %1834 = vmatpush1.msra.mxu0 0.0
        %1835 = vmatprep.subr.mxu0 0.0
        %1836 = vmatpush1.msra.mxu0 0.0
        %1837 = vmatprep.subr.mxu0 0.0
        %1838 = vmatpush1.msra.mxu0 0.0
        %1839 = vmatprep.subr.mxu0 0.0
        %1840 = vmatpush1.msra.mxu0 0.0
        %1841 = vmatprep.subr.mxu0 0.0
        %1842 = vmatpush1.msra.mxu0 %v1805
        %1843 = vmatprep.subr.mxu0 0.0
        %1844 = vmatpush1.msra.mxu0 %v1804
        %1845 = vmatprep.subr.mxu0 0.0
        %1846 = vmatpush1.msra.mxu0 %v1803
        %1847 = vmatprep.subr.mxu0 0.0
        %1848 = vmatpush1.msra.mxu0 %v1802
        %1849 = vmatprep.subr.mxu0 0.0
        %1850 = vmatpush2.msra.mxu0 0.0
        %1851 = vmatprep.subr.mxu0 0.0
        %1852 = vmatpush2.msra.mxu0 0.0
        %1853 = vmatprep.subr.mxu0 0.0
        %1854 = vmatpush2.msra.mxu0 0.0
        %1855 = vmatprep.subr.mxu0 0.0
        %1856 = vmatpush2.msra.mxu0 0.0
        %1857 = vmatprep.subr.mxu0 0.0
        %1858 = vmatpush2.msra.mxu0 0.0
        %1859 = vmatprep.subr.mxu0 0.0
        %1860 = vmatpush2.msra.mxu0 0.0
        %1861 = vmatprep.subr.mxu0 0.0
        %1862 = vmatpush2.msra.mxu0 0.0
        %1863 = vmatprep.subr.mxu0 0.0
        %1864 = vmatpush2.msra.mxu0 0.0
        %1865 = vmatprep.subr.mxu0 0.0
        %1866 = vmatpush2.msra.mxu0 0.0
        %1867 = vmatprep.subr.mxu0 0.0
        %1868 = vmatpush2.msra.mxu0 0.0
        %1869 = vmatprep.subr.mxu0 0.0
        %1870 = vmatpush2.msra.mxu0 0.0
        %1871 = vmatprep.subr.mxu0 0.0
        %1872 = vmatpush2.msra.mxu0 0.0
        %1873 = vmatprep.subr.mxu0 0.0
        %1874 = vmatpush2.msra.mxu0 0.0
        %1875 = vmatprep.subr.mxu0 0.0
        %1876 = vmatpush2.msra.mxu0 0.0
        %1877 = vmatprep.subr.mxu0 0.0
        %1878 = vmatpush2.msra.mxu0 0.0
        %1879 = vmatprep.subr.mxu0 0.0
        %1880 = vmatpush2.msra.mxu0 0.0
        %1881 = vmatprep.mubr.f32.mxu0 0.0
        %1882 = vmatmul.mubr.f32.gmra.mxu0 %v1815
        %v1883 = vpop.f32.mrf.mxu0
        %v1884 = vadd.f32 %v1811, %v1883
        %v1885 = vpop.f32.mrf.mxu0
        %1886 = vdwg.mxu0
        %1887 = vst [vmem:[%s400] sm:$0xff] %v1884
        %s1888 = sand.u32 %s215, 1
        %s1889 = scalar_lea.sflag [#allocation4], %s1888
        %s1890 = sand.u32 %s215, 1
        %s1891 = smul.addr %s1890, 8
        %s1892 = scalar_lea.vmem [#allocation11], %s1891
        // Predicated region
        $region73: #{tpu_custom_call.1} parent=51 // pred_check
          %p1893 = pneg %p225
        $region74: #{tpu_custom_call.1} parent=51 // pred_check_branch
          %1895 = sbr.rel (%p1893) target = $region76
        $region75: #{tpu_custom_call.1} parent=51 // pred_region
          %s1897 = ssub.s32 128, 128
          %1898 = vsyncadd %s1889, %s1897
          %s1899 = smul.addr %s29, 128
          %s1900 = scalar_lea.hbm %s8, %s1899
          %s1902 = sshll.u32 %s1892, 4
          %s1903 = int_to_ptr.vmem [resolvable:$true] %s1902
          %1905 = dma.vmem_to_hbm [thread:$0]  %s1903, 128, %s1900, %s1889
        $region76: #{tpu_custom_call.1} parent=51 // pred_fallthru
          _
      $region52: #{tpu_custom_call.1} parent=5 // pred_fallthru
        _
      %p1906 = scmp.le.s32.totalorder 2, %s24
      // Predicated region
      $region77: #{tpu_custom_call.1} parent=5 // pred_check
        %p1907 = pneg %p1906
      $region78: #{tpu_custom_call.1} parent=5 // pred_check_branch
        %1909 = sbr.rel (%p1907) target = $region80
      $region79: #{tpu_custom_call.1} parent=5 // pred_region
        %s1910 = ssub.s32 %s24, 2
        // Predicated region
        $region81: #{tpu_custom_call.1} parent=79 // pred_check
          %p1911 = pneg %p231
        $region82: #{tpu_custom_call.1} parent=79 // pred_check_branch
          %1913 = sbr.rel (%p1911) target = $region84
        $region83: #{tpu_custom_call.1} parent=79 // pred_region
          %s1914 = sand.u32 %s216, 1
          %s1915 = scalar_lea.sflag [#allocation4], %s1914
          %s1916 = sand.u32 %s216, 1
          %s1917 = smul.addr %s1916, 8
          %s1918 = scalar_lea.vmem [#allocation11], %s1917
          %1919 = dma.done %s1915, 128
        $region84: #{tpu_custom_call.1} parent=79 // pred_fallthru
          _
      $region80: #{tpu_custom_call.1} parent=5 // pred_fallthru
        _
    $region6: #{tpu_custom_call.1} parent=1 // loop_footer
      %s28 = sadd.s32 1, %s24
    $region7: #{tpu_custom_call.1} parent=1 // loop_footer_branch
      %23 = sbr.rel target = $region3
    $region8: #{tpu_custom_call.1} parent=1 // loop_exit
      _
    %1920 = vsyncpa [#allocation3], 1
    %s1921 = scalar_lea.sflag [#allocation3], 1
    %1922 = vsyncpa %s1921, 1
    %1923 = vsyncpa [#allocation6], 1
    %s1924 = scalar_lea.sflag [#allocation6], 1
    %1925 = vsyncpa %s1924, 1
    %1926 = vsyncpa [#allocation9], 1
    %1927 = vsyncpa [#allocation4], 1
    %s1928 = scalar_lea.sflag [#allocation4], 1
    %1929 = vsyncpa %s1928, 1

</llo_original>
